<compile_context>
chip_gen: v5e
topology: v5e:2x2
jax: 0.10.0
libtpu: 0.0.40
codegen_flags: <defaults>
</compile_context>

<pallas_src>
import functools

import jax
import jax.numpy as jnp
from jax import lax
from jax.experimental import pallas as pl
from jax.experimental.pallas import tpu as pltpu


# ------------------------------ Pallas kernel ------------------------------ #

def _resblock_kernel(x_ref, m_ref, w1_ref, b1_ref, w2_ref, b2_ref,
                     w3_ref, b3_ref, o_ref, y1_ref, *, stride, wo, identity):
    """One batch sample per grid step; all intermediates live in VMEM."""
    nph, rq, cin = x_ref.shape[1], x_ref.shape[2], x_ref.shape[3]
    cmid = w1_ref.shape[1]
    cpad = o_ref.shape[2]
    pad = wo + 1                                  # flat halo for the +/-1 row/col taps

    # Zero only the halo rows (interior [pad, pad+rq) is fully overwritten below).
    # Re-done every step (tiny: 2*pad rows/phase, bf16) so it stays correct when the
    # "parallel" batch axis is split across TensorCores (per-core scratch, and that
    # core may never execute program_id == 0).
    zero_halo = jnp.zeros((pad, cmid), jnp.bfloat16)
    for p in range(nph):
        y1_ref[p, 0:pad, :] = zero_halo
        y1_ref[p, pad + rq:pad + rq + pad, :] = zero_halo

    # ---- conv1 (1x1) + BN + ReLU: per stride-phase, staged bf16 into scratch ----
    for p in range(nph):
        y1p = jnp.dot(x_ref[0, p], w1_ref[...], preferred_element_type=jnp.float32)
        y1p = jnp.maximum(y1p + b1_ref[...], 0.0)
        y1_ref[p, pad:pad + rq, :] = y1p.astype(jnp.bfloat16)

    # ---- conv2 (3x3, stride, pad=1) + BN + ReLU: 3 fused taps, K = 3*cmid -------
    acc = jnp.zeros((rq, cmid), jnp.float32)
    for dy in range(3):
        py = (dy - 1) % stride                    # which row-phase this tap reads
        qy = (dy - 1 - py) // stride              # row shift inside that phase
        cols = []
        for dx in range(3):
            px = (dx - 1) % stride
            qx = (dx - 1 - px) // stride
            ph = py * stride + px
            off = pad + qy * wo + qx              # contiguous shifted window
            win = y1_ref[ph, off:off + rq, :]     # bf16
            if qx != 0:                           # mask columns that wrapped rows
                win = win * m_ref[qx + 1]
            cols.append(win)
        win3 = jnp.concatenate(cols, axis=-1)     # (rq, 3*cmid) bf16
        acc = acc + jnp.dot(win3, w2_ref[dy], preferred_element_type=jnp.float32)
    y2 = jnp.maximum(acc + b2_ref[...], 0.0).astype(jnp.bfloat16)

    # ---- conv3 (1x1) + BN (+ fused projection shortcut), add, ReLU --------------
    x0 = x_ref[0, 0]                              # stride-phase (0,0) == x[::s, ::s]
    if identity:
        lhs = y2                                  # (rq, cmid)
    else:
        lhs = jnp.concatenate([y2, x0], axis=-1)  # (rq, cmid + cin): one deep-K pass
    y3 = jnp.dot(lhs, w3_ref[...], preferred_element_type=jnp.float32) + b3_ref[...]
    if identity:
        res = x0.astype(jnp.float32)              # plain add; no eye-matmul
        if cpad > cin:
            res = jnp.concatenate(
                [res, jnp.zeros((rq, cpad - cin), jnp.float32)], axis=-1)
        y3 = y3 + res
    o_ref[...] = jnp.maximum(y3, 0.0).reshape(o_ref.shape).astype(o_ref.dtype)


# --------------------------------- wrapper --------------------------------- #

def res_block_forward(x_nchw, params, stride):
    """ResBlock.forward. x: (N, Cin, H, W) f32 -> (N, 4*out_ch, H/s, W/s) bf16."""
    n, cin, h, w = x_nchw.shape
    s = int(stride)
    assert h % s == 0 and w % s == 0, "spatial dims must be divisible by stride"
    ho, wo = h // s, w // s
    rq, nph = ho * wo, s * s

    w1, w2, w3 = params["w1"], params["w2"], params["w3"]            # HWIO 4-D
    cmid, cout = w1.shape[-1], w3.shape[-1]
    identity = params.get("wr") is None
    if identity:
        assert s == 1 and cin == cout, "identity shortcut needs stride==1, cin==4*out_ch"

    # Lane-dense store: pad output channels to a multiple of 128 (no-op at real
    # ResNet-50 widths 256/512/1024/2048).
    cpad = -(-cout // 128) * 128

    # Fold BN scale into weight output columns; cast to bf16 for the MXU.
    w1s = (w1.reshape(cin, cmid) * params["s1"][None, :]).astype(jnp.bfloat16)
    # 3x3 weights packed per-row (dy) with the 3 dx taps stacked along K
    # -> conv2 runs as 3 deep-K matmuls instead of 9 shallow ones.
    w2s = (w2 * params["s2"][None, None, None, :]
           ).reshape(3, 3 * cmid, cmid).astype(jnp.bfloat16)
    w3s = jnp.pad(w3.reshape(cmid, cout) * params["s3"][None, :],
                  ((0, 0), (0, cpad - cout)))
    b1 = params["b1"].reshape(1, cmid).astype(jnp.float32)
    b2 = params["b2"].reshape(1, cmid).astype(jnp.float32)
    if identity:
        w3r = w3s.astype(jnp.bfloat16)                                # (cmid, cpad)
        b3r = jnp.pad(params["b3"].reshape(1, cout),
                      ((0, 0), (0, cpad - cout))).astype(jnp.float32)
    else:
        wr = params["wr"].reshape(cin, cout)
        wrs = jnp.pad(wr * params["sr"][None, :], ((0, 0), (0, cpad - cout)))
        w3r = jnp.concatenate([w3s, wrs], axis=0).astype(jnp.bfloat16)  # (cmid+cin, cpad)
        b3r = jnp.pad((params["b3"] + params["br"]).reshape(1, cout),
                      ((0, 0), (0, cpad - cout))).astype(jnp.float32)
    kdim = w3r.shape[0]

    # NCHW -> stride-phase-major (N, s*s, Ho*Wo, Cin) in bf16 (one fused transpose;
    # in a full network this layout change would be hoisted across blocks).
    xp = (x_nchw.astype(jnp.bfloat16)
          .reshape(n, cin, ho, s, wo, s)
          .transpose(0, 3, 5, 2, 4, 1)
          .reshape(n, nph, rq, cin))

    # Horizontal halo masks for the column taps qx in {-1, 0, +1}.
    col = jnp.arange(rq, dtype=jnp.int32) % wo
    masks = jnp.stack([col >= 1, jnp.ones((rq,), bool), col <= wo - 2]
                      ).astype(jnp.bfloat16).reshape(3, rq, 1)

    # VMEM budget: double-buffered x/out, single-buffered resident params,
    # bf16 y1 scratch; explicit limit (v5e default is 16 MiB), capped under
    # v7x's 64 MiB physical VMEM.
    need = (2 * nph * rq * cin * 2 + 2 * rq * cpad * 2
            + (w1s.size + w2s.size + w3r.size + masks.size) * 2
            + (b1.size + b2.size + b3r.size) * 4
            + nph * (rq + 2 * (wo + 1)) * cmid * 2)
    vmem_limit = int(min(max(2 * need + (4 << 20), 32 << 20), 64 << 20))

    const = dict(pipeline_mode=pl.Buffered(1))    # batch-invariant: single-buffer
    kernel = functools.partial(_resblock_kernel, stride=s, wo=wo, identity=identity)
    out = pl.pallas_call(
        kernel,
        out_shape=jax.ShapeDtypeStruct((n, rq, cpad), jnp.bfloat16),
        grid_spec=pltpu.PrefetchScalarGridSpec(
            num_scalar_prefetch=0,
            grid=(n,),                                    # >= 2 -> both v7x TCs busy
            in_specs=[
                pl.BlockSpec((1, nph, rq, cin), lambda i: (i, 0, 0, 0)),        # x (phases)
                pl.BlockSpec((3, rq, 1), lambda i: (0, 0, 0), **const),         # col masks
                pl.BlockSpec((cin, cmid), lambda i: (0, 0), **const),           # w1 * s1
                pl.BlockSpec((1, cmid), lambda i: (0, 0), **const),             # b1
                pl.BlockSpec((3, 3 * cmid, cmid), lambda i: (0, 0, 0), **const),# w2 * s2 (dy-packed)
                pl.BlockSpec((1, cmid), lambda i: (0, 0), **const),             # b2
                pl.BlockSpec((kdim, cpad), lambda i: (0, 0), **const),          # [w3*s3; wr*sr]
                pl.BlockSpec((1, cpad), lambda i: (0, 0), **const),             # b3 (+ br)
            ],
            out_specs=pl.BlockSpec((1, rq, cpad), lambda i: (i, 0, 0)),
            scratch_shapes=[pltpu.VMEM((nph, rq + 2 * (wo + 1), cmid), jnp.bfloat16)],
        ),
        compiler_params=pltpu.CompilerParams(
            dimension_semantics=("parallel",),
            vmem_limit_bytes=vmem_limit),
    )(xp, masks, w1s, b1, w2s, b2, w3r, b3r)

    out = out[:, :, :cout].reshape(n, ho, wo, cout)
    # NHWC -> NCHW at the boundary; output stays bf16 (f32 deferred to the caller).
    return jnp.transpose(out, (0, 3, 1, 2))


# ----------------------- deterministic parameter init ---------------------- #

def bn_fold(key, c, eps=1e-5):
    kg, kb, km, kv = jax.random.split(key, 4)
    gamma = 1.0 + 0.1 * jax.random.normal(kg, (c,), jnp.float32)
    beta = 0.1 * jax.random.normal(kb, (c,), jnp.float32)
    mean = 0.1 * jax.random.normal(km, (c,), jnp.float32)
    var = jnp.abs(1.0 + 0.1 * jax.random.normal(kv, (c,), jnp.float32))
    scale = gamma / jnp.sqrt(var + eps)
    bias = beta - mean * scale
    return scale, bias


def init_resblock_params(key, in_channel, out_channel, stride):
    cmid, cout = out_channel, out_channel * 4
    k = jax.random.split(key, 8)
    p = dict(
        w1=0.2 * jax.random.normal(k[0], (1, 1, in_channel, cmid), jnp.float32),
        w2=0.2 * jax.random.normal(k[1], (3, 3, cmid, cmid), jnp.float32),
        w3=0.2 * jax.random.normal(k[2], (1, 1, cmid, cout), jnp.float32),
    )
    p["s1"], p["b1"] = bn_fold(k[3], cmid)
    p["s2"], p["b2"] = bn_fold(k[4], cmid)
    p["s3"], p["b3"] = bn_fold(k[5], cout)
    if in_channel != cout or stride != 1:
        p["wr"] = 0.2 * jax.random.normal(k[6], (1, 1, in_channel, cout), jnp.float32)
        p["sr"], p["br"] = bn_fold(k[7], cout)
    return p


# ----------------------------- pure-JAX reference --------------------------- #

def ref_forward(x_nchw, p, stride):
    x = jnp.transpose(x_nchw, (0, 2, 3, 1))

    def conv(a, w4, s, pad):
        return lax.conv_general_dilated(
            a, w4, (s, s), [(pad, pad), (pad, pad)],
            dimension_numbers=("NHWC", "HWIO", "NHWC"),
            precision=lax.Precision.HIGHEST)

    y = jax.nn.relu(conv(x, p["w1"], 1, 0) * p["s1"] + p["b1"])
    y = jax.nn.relu(conv(y, p["w2"], stride, 1) * p["s2"] + p["b2"])
    y = conv(y, p["w3"], 1, 0) * p["s3"] + p["b3"]
    if p.get("wr") is not None:
        r = conv(x, p["wr"], stride, 0) * p["sr"] + p["br"]
    else:
        r = x
    return jnp.transpose(jax.nn.relu(y + r), (0, 3, 1, 2))


# ---------------------------------- main ------------------------------------ #

if __name__ == "__main__":
    key = jax.random.PRNGKey(0)
    fwd = jax.jit(res_block_forward, static_argnames=("stride",))

    def run_case(case_key, in_channel, out_channel, stride, n, h, w):
        kp, kx = jax.random.split(case_key)
        params = init_resblock_params(kp, in_channel, out_channel, stride)
        x = jax.random.normal(kx, (n, in_channel, h, w), jnp.float32)
        out = jax.block_until_ready(fwd(x, params, stride=stride))
        ref = ref_forward(x, params, stride)
        assert out.shape == (n, 4 * out_channel, h // stride, w // stride), out.shape
        err = float(jnp.max(jnp.abs(out.astype(jnp.float32) - ref)))
        # bf16 MXU operands, f32 accumulation, bf16 output vs. a pure-f32 reference:
        # allow ~2% of the output scale.
        tol = 2e-2 * (1.0 + float(jnp.max(jnp.abs(ref))))
        assert err < tol, f"max abs err {err} (tol {tol})"
        return err

    # Projection-shortcut case (stride 2) -- same shapes as the original test.
    run_case(jax.random.fold_in(key, 1), in_channel=8, out_channel=8, stride=2,
             n=2, h=16, w=16)
    # Identity-shortcut case (stride 1, in_channel == 4*out_channel).
    run_case(jax.random.fold_in(key, 2), in_channel=32, out_channel=8, stride=1,
             n=2, h=8, w=8)
    # Projection-shortcut case with stride 1 (channel change only).
    run_case(jax.random.fold_in(key, 3), in_channel=16, out_channel=8, stride=1,
             n=2, h=8, w=8)

    print("KERNEL_OK")
</pallas_src>

<mosaic_0001>
module attributes {stable_mosaic.version = 11 : i64} {
  func.func @_resblock_kernel(%arg0: i32, %arg1: memref<1x4x64x8xbf16, #tpu.memory_space<vmem>>, %arg2: memref<3x64x1xbf16, #tpu.memory_space<vmem>>, %arg3: memref<8x8xbf16, #tpu.memory_space<vmem>>, %arg4: memref<1x8xf32, #tpu.memory_space<vmem>>, %arg5: memref<3x24x8xbf16, #tpu.memory_space<vmem>>, %arg6: memref<1x8xf32, #tpu.memory_space<vmem>>, %arg7: memref<16x128xbf16, #tpu.memory_space<vmem>>, %arg8: memref<1x128xf32, #tpu.memory_space<vmem>>, %arg9: memref<1x64x128xbf16, #tpu.memory_space<vmem>>, %arg10: memref<4x82x8xbf16, #tpu.memory_space<vmem>>) attributes {dimension_semantics = [#tpu.dimension_semantics<parallel>], iteration_bounds = array<i64: 2>, scalar_prefetch = 0 : i64, scratch_operands = 1 : i64, tpu.core_type = #tpu.core_type<tc>, window_params = [{transform_indices = @transform_0, window_bounds = array<i64: 1, 4, 64, 8>}, {pipeline_mode = #tpu.pipeline_mode<synchronous>, transform_indices = @transform_1, window_bounds = array<i64: 3, 64, 1>}, {pipeline_mode = #tpu.pipeline_mode<synchronous>, transform_indices = @transform_2, window_bounds = array<i64: 8, 8>}, {pipeline_mode = #tpu.pipeline_mode<synchronous>, transform_indices = @transform_3, window_bounds = array<i64: 1, 8>}, {pipeline_mode = #tpu.pipeline_mode<synchronous>, transform_indices = @transform_4, window_bounds = array<i64: 3, 24, 8>}, {pipeline_mode = #tpu.pipeline_mode<synchronous>, transform_indices = @transform_5, window_bounds = array<i64: 1, 8>}, {pipeline_mode = #tpu.pipeline_mode<synchronous>, transform_indices = @transform_6, window_bounds = array<i64: 16, 128>}, {pipeline_mode = #tpu.pipeline_mode<synchronous>, transform_indices = @transform_7, window_bounds = array<i64: 1, 128>}, {transform_indices = @transform_8, window_bounds = array<i64: 1, 64, 128>}]} {
    %cst = arith.constant 0.000000e+00 : bf16
    %0 = vector.broadcast %cst : bf16 to vector<9x8xbf16>
    %c0 = arith.constant 0 : index
    %c0_0 = arith.constant 0 : index
    %c0_1 = arith.constant 0 : index
    %1 = vector.load %arg10[%c0, %c0_0, %c0_1] : memref<4x82x8xbf16, #tpu.memory_space<vmem>>, vector<1x9x8xbf16>
    %2 = vector.shape_cast %1 : vector<1x9x8xbf16> to vector<9x8xbf16>
    %3 = vector.shape_cast %0 : vector<9x8xbf16> to vector<1x9x8xbf16>
    tpu.vector_store %arg10[%c0, %c0_0, %c0_1], %3 {strides = array<i32>} : memref<4x82x8xbf16, #tpu.memory_space<vmem>>, vector<1x9x8xbf16>,
    %c0_2 = arith.constant 0 : index
    %c73 = arith.constant 73 : index
    %c0_3 = arith.constant 0 : index
    %4 = vector.load %arg10[%c0_2, %c73, %c0_3] : memref<4x82x8xbf16, #tpu.memory_space<vmem>>, vector<1x9x8xbf16>
    %5 = vector.shape_cast %4 : vector<1x9x8xbf16> to vector<9x8xbf16>
    %6 = vector.shape_cast %0 : vector<9x8xbf16> to vector<1x9x8xbf16>
    tpu.vector_store %arg10[%c0_2, %c73, %c0_3], %6 {strides = array<i32>} : memref<4x82x8xbf16, #tpu.memory_space<vmem>>, vector<1x9x8xbf16>,
    %c1 = arith.constant 1 : index
    %c0_4 = arith.constant 0 : index
    %c0_5 = arith.constant 0 : index
    %7 = vector.load %arg10[%c1, %c0_4, %c0_5] : memref<4x82x8xbf16, #tpu.memory_space<vmem>>, vector<1x9x8xbf16>
    %8 = vector.shape_cast %7 : vector<1x9x8xbf16> to vector<9x8xbf16>
    %9 = vector.shape_cast %0 : vector<9x8xbf16> to vector<1x9x8xbf16>
    tpu.vector_store %arg10[%c1, %c0_4, %c0_5], %9 {strides = array<i32>} : memref<4x82x8xbf16, #tpu.memory_space<vmem>>, vector<1x9x8xbf16>,
    %c1_6 = arith.constant 1 : index
    %c73_7 = arith.constant 73 : index
    %c0_8 = arith.constant 0 : index
    %10 = vector.load %arg10[%c1_6, %c73_7, %c0_8] : memref<4x82x8xbf16, #tpu.memory_space<vmem>>, vector<1x9x8xbf16>
    %11 = vector.shape_cast %10 : vector<1x9x8xbf16> to vector<9x8xbf16>
    %12 = vector.shape_cast %0 : vector<9x8xbf16> to vector<1x9x8xbf16>
    tpu.vector_store %arg10[%c1_6, %c73_7, %c0_8], %12 {strides = array<i32>} : memref<4x82x8xbf16, #tpu.memory_space<vmem>>, vector<1x9x8xbf16>,
    %c2 = arith.constant 2 : index
    %c0_9 = arith.constant 0 : index
    %c0_10 = arith.constant 0 : index
    %13 = vector.load %arg10[%c2, %c0_9, %c0_10] : memref<4x82x8xbf16, #tpu.memory_space<vmem>>, vector<1x9x8xbf16>
    %14 = vector.shape_cast %13 : vector<1x9x8xbf16> to vector<9x8xbf16>
    %15 = vector.shape_cast %0 : vector<9x8xbf16> to vector<1x9x8xbf16>
    tpu.vector_store %arg10[%c2, %c0_9, %c0_10], %15 {strides = array<i32>} : memref<4x82x8xbf16, #tpu.memory_space<vmem>>, vector<1x9x8xbf16>,
    %c2_11 = arith.constant 2 : index
    %c73_12 = arith.constant 73 : index
    %c0_13 = arith.constant 0 : index
    %16 = vector.load %arg10[%c2_11, %c73_12, %c0_13] : memref<4x82x8xbf16, #tpu.memory_space<vmem>>, vector<1x9x8xbf16>
    %17 = vector.shape_cast %16 : vector<1x9x8xbf16> to vector<9x8xbf16>
    %18 = vector.shape_cast %0 : vector<9x8xbf16> to vector<1x9x8xbf16>
    tpu.vector_store %arg10[%c2_11, %c73_12, %c0_13], %18 {strides = array<i32>} : memref<4x82x8xbf16, #tpu.memory_space<vmem>>, vector<1x9x8xbf16>,
    %c3 = arith.constant 3 : index
    %c0_14 = arith.constant 0 : index
    %c0_15 = arith.constant 0 : index
    %19 = vector.load %arg10[%c3, %c0_14, %c0_15] : memref<4x82x8xbf16, #tpu.memory_space<vmem>>, vector<1x9x8xbf16>
    %20 = vector.shape_cast %19 : vector<1x9x8xbf16> to vector<9x8xbf16>
    %21 = vector.shape_cast %0 : vector<9x8xbf16> to vector<1x9x8xbf16>
    tpu.vector_store %arg10[%c3, %c0_14, %c0_15], %21 {strides = array<i32>} : memref<4x82x8xbf16, #tpu.memory_space<vmem>>, vector<1x9x8xbf16>,
    %c3_16 = arith.constant 3 : index
    %c73_17 = arith.constant 73 : index
    %c0_18 = arith.constant 0 : index
    %22 = vector.load %arg10[%c3_16, %c73_17, %c0_18] : memref<4x82x8xbf16, #tpu.memory_space<vmem>>, vector<1x9x8xbf16>
    %23 = vector.shape_cast %22 : vector<1x9x8xbf16> to vector<9x8xbf16>
    %24 = vector.shape_cast %0 : vector<9x8xbf16> to vector<1x9x8xbf16>
    tpu.vector_store %arg10[%c3_16, %c73_17, %c0_18], %24 {strides = array<i32>} : memref<4x82x8xbf16, #tpu.memory_space<vmem>>, vector<1x9x8xbf16>,
    %c0_19 = arith.constant 0 : index
    %c0_20 = arith.constant 0 : index
    %c0_21 = arith.constant 0 : index
    %c0_22 = arith.constant 0 : index
    %25 = vector.load %arg1[%c0_19, %c0_20, %c0_21, %c0_22] : memref<1x4x64x8xbf16, #tpu.memory_space<vmem>>, vector<1x1x64x8xbf16>
    %26 = vector.shape_cast %25 : vector<1x1x64x8xbf16> to vector<64x8xbf16>
    %c0_23 = arith.constant 0 : index
    %c0_24 = arith.constant 0 : index
    %27 = vector.load %arg3[%c0_23, %c0_24] : memref<8x8xbf16, #tpu.memory_space<vmem>>, vector<8x8xbf16>
    %cst_25 = arith.constant dense<0.000000e+00> : vector<64x8xf32>
    %28 = tpu.matmul %26, %27, %cst_25 {dimension_numbers = #tpu.dot_dimension_numbers<[1], [0], [0], [1], [0, 0, 1, 1], [], []>} : vector<64x8xbf16>, vector<8x8xbf16>, vector<64x8xf32> -> vector<64x8xf32>
    %c0_26 = arith.constant 0 : index
    %c0_27 = arith.constant 0 : index
    %29 = vector.load %arg4[%c0_26, %c0_27] : memref<1x8xf32, #tpu.memory_space<vmem>>, vector<1x8xf32>
    %30 = vector.broadcast %29 : vector<1x8xf32> to vector<64x8xf32>
    %31 = arith.addf %28, %30 : vector<64x8xf32>
    %cst_28 = arith.constant 0.000000e+00 : f32
    %32 = vector.broadcast %cst_28 : f32 to vector<64x8xf32>
    %33 = arith.maximumf %31, %32 : vector<64x8xf32>
    %34 = arith.truncf %33 : vector<64x8xf32> to vector<64x8xbf16>
    %c0_29 = arith.constant 0 : index
    %c9 = arith.constant 9 : index
    %c0_30 = arith.constant 0 : index
    %35 = vector.load %arg10[%c0_29, %c9, %c0_30] : memref<4x82x8xbf16, #tpu.memory_space<vmem>>, vector<1x64x8xbf16>
    %36 = vector.shape_cast %35 : vector<1x64x8xbf16> to vector<64x8xbf16>
    %37 = vector.shape_cast %34 : vector<64x8xbf16> to vector<1x64x8xbf16>
    tpu.vector_store %arg10[%c0_29, %c9, %c0_30], %37 {strides = array<i32>} : memref<4x82x8xbf16, #tpu.memory_space<vmem>>, vector<1x64x8xbf16>,
    %c0_31 = arith.constant 0 : index
    %c1_32 = arith.constant 1 : index
    %c0_33 = arith.constant 0 : index
    %c0_34 = arith.constant 0 : index
    %38 = vector.load %arg1[%c0_31, %c1_32, %c0_33, %c0_34] : memref<1x4x64x8xbf16, #tpu.memory_space<vmem>>, vector<1x1x64x8xbf16>
    %39 = vector.shape_cast %38 : vector<1x1x64x8xbf16> to vector<64x8xbf16>
    %c0_35 = arith.constant 0 : index
    %c0_36 = arith.constant 0 : index
    %40 = vector.load %arg3[%c0_35, %c0_36] : memref<8x8xbf16, #tpu.memory_space<vmem>>, vector<8x8xbf16>
    %cst_37 = arith.constant dense<0.000000e+00> : vector<64x8xf32>
    %41 = tpu.matmul %39, %40, %cst_37 {dimension_numbers = #tpu.dot_dimension_numbers<[1], [0], [0], [1], [0, 0, 1, 1], [], []>} : vector<64x8xbf16>, vector<8x8xbf16>, vector<64x8xf32> -> vector<64x8xf32>
    %c0_38 = arith.constant 0 : index
    %c0_39 = arith.constant 0 : index
    %42 = vector.load %arg4[%c0_38, %c0_39] : memref<1x8xf32, #tpu.memory_space<vmem>>, vector<1x8xf32>
    %43 = vector.broadcast %42 : vector<1x8xf32> to vector<64x8xf32>
    %44 = arith.addf %41, %43 : vector<64x8xf32>
    %cst_40 = arith.constant 0.000000e+00 : f32
    %45 = vector.broadcast %cst_40 : f32 to vector<64x8xf32>
    %46 = arith.maximumf %44, %45 : vector<64x8xf32>
    %47 = arith.truncf %46 : vector<64x8xf32> to vector<64x8xbf16>
    %c1_41 = arith.constant 1 : index
    %c9_42 = arith.constant 9 : index
    %c0_43 = arith.constant 0 : index
    %48 = vector.load %arg10[%c1_41, %c9_42, %c0_43] : memref<4x82x8xbf16, #tpu.memory_space<vmem>>, vector<1x64x8xbf16>
    %49 = vector.shape_cast %48 : vector<1x64x8xbf16> to vector<64x8xbf16>
    %50 = vector.shape_cast %47 : vector<64x8xbf16> to vector<1x64x8xbf16>
    tpu.vector_store %arg10[%c1_41, %c9_42, %c0_43], %50 {strides = array<i32>} : memref<4x82x8xbf16, #tpu.memory_space<vmem>>, vector<1x64x8xbf16>,
    %c0_44 = arith.constant 0 : index
    %c2_45 = arith.constant 2 : index
    %c0_46 = arith.constant 0 : index
    %c0_47 = arith.constant 0 : index
    %51 = vector.load %arg1[%c0_44, %c2_45, %c0_46, %c0_47] : memref<1x4x64x8xbf16, #tpu.memory_space<vmem>>, vector<1x1x64x8xbf16>
    %52 = vector.shape_cast %51 : vector<1x1x64x8xbf16> to vector<64x8xbf16>
    %c0_48 = arith.constant 0 : index
    %c0_49 = arith.constant 0 : index
    %53 = vector.load %arg3[%c0_48, %c0_49] : memref<8x8xbf16, #tpu.memory_space<vmem>>, vector<8x8xbf16>
    %cst_50 = arith.constant dense<0.000000e+00> : vector<64x8xf32>
    %54 = tpu.matmul %52, %53, %cst_50 {dimension_numbers = #tpu.dot_dimension_numbers<[1], [0], [0], [1], [0, 0, 1, 1], [], []>} : vector<64x8xbf16>, vector<8x8xbf16>, vector<64x8xf32> -> vector<64x8xf32>
    %c0_51 = arith.constant 0 : index
    %c0_52 = arith.constant 0 : index
    %55 = vector.load %arg4[%c0_51, %c0_52] : memref<1x8xf32, #tpu.memory_space<vmem>>, vector<1x8xf32>
    %56 = vector.broadcast %55 : vector<1x8xf32> to vector<64x8xf32>
    %57 = arith.addf %54, %56 : vector<64x8xf32>
    %cst_53 = arith.constant 0.000000e+00 : f32
    %58 = vector.broadcast %cst_53 : f32 to vector<64x8xf32>
    %59 = arith.maximumf %57, %58 : vector<64x8xf32>
    %60 = arith.truncf %59 : vector<64x8xf32> to vector<64x8xbf16>
    %c2_54 = arith.constant 2 : index
    %c9_55 = arith.constant 9 : index
    %c0_56 = arith.constant 0 : index
    %61 = vector.load %arg10[%c2_54, %c9_55, %c0_56] : memref<4x82x8xbf16, #tpu.memory_space<vmem>>, vector<1x64x8xbf16>
    %62 = vector.shape_cast %61 : vector<1x64x8xbf16> to vector<64x8xbf16>
    %63 = vector.shape_cast %60 : vector<64x8xbf16> to vector<1x64x8xbf16>
    tpu.vector_store %arg10[%c2_54, %c9_55, %c0_56], %63 {strides = array<i32>} : memref<4x82x8xbf16, #tpu.memory_space<vmem>>, vector<1x64x8xbf16>,
    %c0_57 = arith.constant 0 : index
    %c3_58 = arith.constant 3 : index
    %c0_59 = arith.constant 0 : index
    %c0_60 = arith.constant 0 : index
    %64 = vector.load %arg1[%c0_57, %c3_58, %c0_59, %c0_60] : memref<1x4x64x8xbf16, #tpu.memory_space<vmem>>, vector<1x1x64x8xbf16>
    %65 = vector.shape_cast %64 : vector<1x1x64x8xbf16> to vector<64x8xbf16>
    %c0_61 = arith.constant 0 : index
    %c0_62 = arith.constant 0 : index
    %66 = vector.load %arg3[%c0_61, %c0_62] : memref<8x8xbf16, #tpu.memory_space<vmem>>, vector<8x8xbf16>
    %cst_63 = arith.constant dense<0.000000e+00> : vector<64x8xf32>
    %67 = tpu.matmul %65, %66, %cst_63 {dimension_numbers = #tpu.dot_dimension_numbers<[1], [0], [0], [1], [0, 0, 1, 1], [], []>} : vector<64x8xbf16>, vector<8x8xbf16>, vector<64x8xf32> -> vector<64x8xf32>
    %c0_64 = arith.constant 0 : index
    %c0_65 = arith.constant 0 : index
    %68 = vector.load %arg4[%c0_64, %c0_65] : memref<1x8xf32, #tpu.memory_space<vmem>>, vector<1x8xf32>
    %69 = vector.broadcast %68 : vector<1x8xf32> to vector<64x8xf32>
    %70 = arith.addf %67, %69 : vector<64x8xf32>
    %cst_66 = arith.constant 0.000000e+00 : f32
    %71 = vector.broadcast %cst_66 : f32 to vector<64x8xf32>
    %72 = arith.maximumf %70, %71 : vector<64x8xf32>
    %73 = arith.truncf %72 : vector<64x8xf32> to vector<64x8xbf16>
    %c3_67 = arith.constant 3 : index
    %c9_68 = arith.constant 9 : index
    %c0_69 = arith.constant 0 : index
    %74 = vector.load %arg10[%c3_67, %c9_68, %c0_69] : memref<4x82x8xbf16, #tpu.memory_space<vmem>>, vector<1x64x8xbf16>
    %75 = vector.shape_cast %74 : vector<1x64x8xbf16> to vector<64x8xbf16>
    %76 = vector.shape_cast %73 : vector<64x8xbf16> to vector<1x64x8xbf16>
    tpu.vector_store %arg10[%c3_67, %c9_68, %c0_69], %76 {strides = array<i32>} : memref<4x82x8xbf16, #tpu.memory_space<vmem>>, vector<1x64x8xbf16>,
    %cst_70 = arith.constant 0.000000e+00 : f32
    %77 = vector.broadcast %cst_70 : f32 to vector<64x8xf32>
    %c3_71 = arith.constant 3 : index
    %c0_72 = arith.constant 0 : index
    %c0_73 = arith.constant 0 : index
    %78 = vector.load %arg10[%c3_71, %c0_72, %c0_73] : memref<4x82x8xbf16, #tpu.memory_space<vmem>>, vector<1x64x8xbf16>
    %79 = vector.shape_cast %78 : vector<1x64x8xbf16> to vector<64x8xbf16>
    %c0_74 = arith.constant 0 : index
    %c0_75 = arith.constant 0 : index
    %c0_76 = arith.constant 0 : index
    %80 = vector.load %arg2[%c0_74, %c0_75, %c0_76] : memref<3x64x1xbf16, #tpu.memory_space<vmem>>, vector<1x64x1xbf16>
    %81 = vector.shape_cast %80 : vector<1x64x1xbf16> to vector<64x1xbf16>
    %82 = vector.broadcast %81 : vector<64x1xbf16> to vector<64x8xbf16>
    %83 = arith.mulf %79, %82 : vector<64x8xbf16>
    %c2_77 = arith.constant 2 : index
    %c1_78 = arith.constant 1 : index
    %c0_79 = arith.constant 0 : index
    %84 = vector.load %arg10[%c2_77, %c1_78, %c0_79] : memref<4x82x8xbf16, #tpu.memory_space<vmem>>, vector<1x64x8xbf16>
    %85 = vector.shape_cast %84 : vector<1x64x8xbf16> to vector<64x8xbf16>
    %c3_80 = arith.constant 3 : index
    %c1_81 = arith.constant 1 : index
    %c0_82 = arith.constant 0 : index
    %86 = vector.load %arg10[%c3_80, %c1_81, %c0_82] : memref<4x82x8xbf16, #tpu.memory_space<vmem>>, vector<1x64x8xbf16>
    %87 = vector.shape_cast %86 : vector<1x64x8xbf16> to vector<64x8xbf16>
    %88 = tpu.concatenate %83, %85, %87 in 1 : vector<64x8xbf16>, vector<64x8xbf16>, vector<64x8xbf16> -> vector<64x24xbf16>
    %c0_83 = arith.constant 0 : index
    %c0_84 = arith.constant 0 : index
    %c0_85 = arith.constant 0 : index
    %89 = vector.load %arg5[%c0_83, %c0_84, %c0_85] : memref<3x24x8xbf16, #tpu.memory_space<vmem>>, vector<1x24x8xbf16>
    %90 = vector.shape_cast %89 : vector<1x24x8xbf16> to vector<24x8xbf16>
    %cst_86 = arith.constant dense<0.000000e+00> : vector<64x8xf32>
    %91 = tpu.matmul %88, %90, %cst_86 {dimension_numbers = #tpu.dot_dimension_numbers<[1], [0], [0], [1], [0, 0, 1, 1], [], []>} : vector<64x24xbf16>, vector<24x8xbf16>, vector<64x8xf32> -> vector<64x8xf32>
    %92 = arith.addf %77, %91 : vector<64x8xf32>
    %c1_87 = arith.constant 1 : index
    %c8 = arith.constant 8 : index
    %c0_88 = arith.constant 0 : index
    %93 = vector.load %arg10[%c1_87, %c8, %c0_88] : memref<4x82x8xbf16, #tpu.memory_space<vmem>>, vector<1x64x8xbf16>
    %94 = vector.shape_cast %93 : vector<1x64x8xbf16> to vector<64x8xbf16>
    %c0_89 = arith.constant 0 : index
    %c0_90 = arith.constant 0 : index
    %c0_91 = arith.constant 0 : index
    %95 = vector.load %arg2[%c0_89, %c0_90, %c0_91] : memref<3x64x1xbf16, #tpu.memory_space<vmem>>, vector<1x64x1xbf16>
    %96 = vector.shape_cast %95 : vector<1x64x1xbf16> to vector<64x1xbf16>
    %97 = vector.broadcast %96 : vector<64x1xbf16> to vector<64x8xbf16>
    %98 = arith.mulf %94, %97 : vector<64x8xbf16>
    %c0_92 = arith.constant 0 : index
    %c9_93 = arith.constant 9 : index
    %c0_94 = arith.constant 0 : index
    %99 = vector.load %arg10[%c0_92, %c9_93, %c0_94] : memref<4x82x8xbf16, #tpu.memory_space<vmem>>, vector<1x64x8xbf16>
    %100 = vector.shape_cast %99 : vector<1x64x8xbf16> to vector<64x8xbf16>
    %c1_95 = arith.constant 1 : index
    %c9_96 = arith.constant 9 : index
    %c0_97 = arith.constant 0 : index
    %101 = vector.load %arg10[%c1_95, %c9_96, %c0_97] : memref<4x82x8xbf16, #tpu.memory_space<vmem>>, vector<1x64x8xbf16>
    %102 = vector.shape_cast %101 : vector<1x64x8xbf16> to vector<64x8xbf16>
    %103 = tpu.concatenate %98, %100, %102 in 1 : vector<64x8xbf16>, vector<64x8xbf16>, vector<64x8xbf16> -> vector<64x24xbf16>
    %c1_98 = arith.constant 1 : index
    %c0_99 = arith.constant 0 : index
    %c0_100 = arith.constant 0 : index
    %104 = vector.load %arg5[%c1_98, %c0_99, %c0_100] : memref<3x24x8xbf16, #tpu.memory_space<vmem>>, vector<1x24x8xbf16>
    %105 = vector.shape_cast %104 : vector<1x24x8xbf16> to vector<24x8xbf16>
    %cst_101 = arith.constant dense<0.000000e+00> : vector<64x8xf32>
    %106 = tpu.matmul %103, %105, %cst_101 {dimension_numbers = #tpu.dot_dimension_numbers<[1], [0], [0], [1], [0, 0, 1, 1], [], []>} : vector<64x24xbf16>, vector<24x8xbf16>, vector<64x8xf32> -> vector<64x8xf32>
    %107 = arith.addf %92, %106 : vector<64x8xf32>
    %c3_102 = arith.constant 3 : index
    %c8_103 = arith.constant 8 : index
    %c0_104 = arith.constant 0 : index
    %108 = vector.load %arg10[%c3_102, %c8_103, %c0_104] : memref<4x82x8xbf16, #tpu.memory_space<vmem>>, vector<1x64x8xbf16>
    %109 = vector.shape_cast %108 : vector<1x64x8xbf16> to vector<64x8xbf16>
    %c0_105 = arith.constant 0 : index
    %c0_106 = arith.constant 0 : index
    %c0_107 = arith.constant 0 : index
    %110 = vector.load %arg2[%c0_105, %c0_106, %c0_107] : memref<3x64x1xbf16, #tpu.memory_space<vmem>>, vector<1x64x1xbf16>
    %111 = vector.shape_cast %110 : vector<1x64x1xbf16> to vector<64x1xbf16>
    %112 = vector.broadcast %111 : vector<64x1xbf16> to vector<64x8xbf16>
    %113 = arith.mulf %109, %112 : vector<64x8xbf16>
    %c2_108 = arith.constant 2 : index
    %c9_109 = arith.constant 9 : index
    %c0_110 = arith.constant 0 : index
    %114 = vector.load %arg10[%c2_108, %c9_109, %c0_110] : memref<4x82x8xbf16, #tpu.memory_space<vmem>>, vector<1x64x8xbf16>
    %115 = vector.shape_cast %114 : vector<1x64x8xbf16> to vector<64x8xbf16>
    %c3_111 = arith.constant 3 : index
    %c9_112 = arith.constant 9 : index
    %c0_113 = arith.constant 0 : index
    %116 = vector.load %arg10[%c3_111, %c9_112, %c0_113] : memref<4x82x8xbf16, #tpu.memory_space<vmem>>, vector<1x64x8xbf16>
    %117 = vector.shape_cast %116 : vector<1x64x8xbf16> to vector<64x8xbf16>
    %118 = tpu.concatenate %113, %115, %117 in 1 : vector<64x8xbf16>, vector<64x8xbf16>, vector<64x8xbf16> -> vector<64x24xbf16>
    %c2_114 = arith.constant 2 : index
    %c0_115 = arith.constant 0 : index
    %c0_116 = arith.constant 0 : index
    %119 = vector.load %arg5[%c2_114, %c0_115, %c0_116] : memref<3x24x8xbf16, #tpu.memory_space<vmem>>, vector<1x24x8xbf16>
    %120 = vector.shape_cast %119 : vector<1x24x8xbf16> to vector<24x8xbf16>
    %cst_117 = arith.constant dense<0.000000e+00> : vector<64x8xf32>
    %121 = tpu.matmul %118, %120, %cst_117 {dimension_numbers = #tpu.dot_dimension_numbers<[1], [0], [0], [1], [0, 0, 1, 1], [], []>} : vector<64x24xbf16>, vector<24x8xbf16>, vector<64x8xf32> -> vector<64x8xf32>
    %122 = arith.addf %107, %121 : vector<64x8xf32>
    %c0_118 = arith.constant 0 : index
    %c0_119 = arith.constant 0 : index
    %123 = vector.load %arg6[%c0_118, %c0_119] : memref<1x8xf32, #tpu.memory_space<vmem>>, vector<1x8xf32>
    %124 = vector.broadcast %123 : vector<1x8xf32> to vector<64x8xf32>
    %125 = arith.addf %122, %124 : vector<64x8xf32>
    %cst_120 = arith.constant 0.000000e+00 : f32
    %126 = vector.broadcast %cst_120 : f32 to vector<64x8xf32>
    %127 = arith.maximumf %125, %126 : vector<64x8xf32>
    %128 = arith.truncf %127 : vector<64x8xf32> to vector<64x8xbf16>
    %c0_121 = arith.constant 0 : index
    %c0_122 = arith.constant 0 : index
    %c0_123 = arith.constant 0 : index
    %c0_124 = arith.constant 0 : index
    %129 = vector.load %arg1[%c0_121, %c0_122, %c0_123, %c0_124] : memref<1x4x64x8xbf16, #tpu.memory_space<vmem>>, vector<1x1x64x8xbf16>
    %130 = vector.shape_cast %129 : vector<1x1x64x8xbf16> to vector<64x8xbf16>
    %131 = tpu.concatenate %128, %130 in 1 : vector<64x8xbf16>, vector<64x8xbf16> -> vector<64x16xbf16>
    %c0_125 = arith.constant 0 : index
    %c0_126 = arith.constant 0 : index
    %132 = vector.load %arg7[%c0_125, %c0_126] : memref<16x128xbf16, #tpu.memory_space<vmem>>, vector<16x128xbf16>
    %cst_127 = arith.constant dense<0.000000e+00> : vector<64x128xf32>
    %133 = tpu.matmul %131, %132, %cst_127 {dimension_numbers = #tpu.dot_dimension_numbers<[1], [0], [0], [1], [0, 0, 1, 1], [], []>} : vector<64x16xbf16>, vector<16x128xbf16>, vector<64x128xf32> -> vector<64x128xf32>
    %c0_128 = arith.constant 0 : index
    %c0_129 = arith.constant 0 : index
    %134 = vector.load %arg8[%c0_128, %c0_129] : memref<1x128xf32, #tpu.memory_space<vmem>>, vector<1x128xf32>
    %135 = vector.broadcast %134 : vector<1x128xf32> to vector<64x128xf32>
    %136 = arith.addf %133, %135 : vector<64x128xf32>
    %cst_130 = arith.constant 0.000000e+00 : f32
    %137 = vector.broadcast %cst_130 : f32 to vector<64x128xf32>
    %138 = arith.maximumf %136, %137 : vector<64x128xf32>
    %139 = vector.shape_cast %138 : vector<64x128xf32> to vector<1x64x128xf32>
    %140 = arith.truncf %139 : vector<1x64x128xf32> to vector<1x64x128xbf16>
    %c0_131 = arith.constant 0 : index
    %c0_132 = arith.constant 0 : index
    %c0_133 = arith.constant 0 : index
    %141 = vector.load %arg9[%c0_131, %c0_132, %c0_133] : memref<1x64x128xbf16, #tpu.memory_space<vmem>>, vector<1x64x128xbf16>
    tpu.vector_store %arg9[%c0_131, %c0_132, %c0_133], %140 {strides = array<i32>} : memref<1x64x128xbf16, #tpu.memory_space<vmem>>, vector<1x64x128xbf16>,
    return
  }
  func.func @transform_0(%arg0: i32) -> (i32, i32, i32, i32) {
    %c0_i32 = arith.constant 0 : i32
    %c0_i32_0 = arith.constant 0 : i32
    %c0_i32_1 = arith.constant 0 : i32
    %c0_i32_2 = arith.constant 0 : i32
    return %arg0, %c0_i32, %c0_i32_0, %c0_i32_1 : i32, i32, i32, i32
  }
  func.func @transform_1(%arg0: i32) -> (i32, i32, i32) {
    %c0_i32 = arith.constant 0 : i32
    %c0_i32_0 = arith.constant 0 : i32
    %c0_i32_1 = arith.constant 0 : i32
    %c0_i32_2 = arith.constant 0 : i32
    return %c0_i32, %c0_i32_0, %c0_i32_1 : i32, i32, i32
  }
  func.func @transform_2(%arg0: i32) -> (i32, i32) {
    %c0_i32 = arith.constant 0 : i32
    %c0_i32_0 = arith.constant 0 : i32
    %c0_i32_1 = arith.constant 0 : i32
    return %c0_i32, %c0_i32_0 : i32, i32
  }
  func.func @transform_3(%arg0: i32) -> (i32, i32) {
    %c0_i32 = arith.constant 0 : i32
    %c0_i32_0 = arith.constant 0 : i32
    %c0_i32_1 = arith.constant 0 : i32
    return %c0_i32, %c0_i32_0 : i32, i32
  }
  func.func @transform_4(%arg0: i32) -> (i32, i32, i32) {
    %c0_i32 = arith.constant 0 : i32
    %c0_i32_0 = arith.constant 0 : i32
    %c0_i32_1 = arith.constant 0 : i32
    %c0_i32_2 = arith.constant 0 : i32
    return %c0_i32, %c0_i32_0, %c0_i32_1 : i32, i32, i32
  }
  func.func @transform_5(%arg0: i32) -> (i32, i32) {
    %c0_i32 = arith.constant 0 : i32
    %c0_i32_0 = arith.constant 0 : i32
    %c0_i32_1 = arith.constant 0 : i32
    return %c0_i32, %c0_i32_0 : i32, i32
  }
  func.func @transform_6(%arg0: i32) -> (i32, i32) {
    %c0_i32 = arith.constant 0 : i32
    %c0_i32_0 = arith.constant 0 : i32
    %c0_i32_1 = arith.constant 0 : i32
    return %c0_i32, %c0_i32_0 : i32, i32
  }
  func.func @transform_7(%arg0: i32) -> (i32, i32) {
    %c0_i32 = arith.constant 0 : i32
    %c0_i32_0 = arith.constant 0 : i32
    %c0_i32_1 = arith.constant 0 : i32
    return %c0_i32, %c0_i32_0 : i32, i32
  }
  func.func @transform_8(%arg0: i32) -> (i32, i32, i32) {
    %c0_i32 = arith.constant 0 : i32
    %c0_i32_0 = arith.constant 0 : i32
    %c0_i32_1 = arith.constant 0 : i32
    return %arg0, %c0_i32, %c0_i32_0 : i32, i32, i32
  }
}

</mosaic_0001>

<llo_original>
// kernel: res_block_forward.1
$region0: #{res_block_forward.1}
  #allocation0 [shape = 'u32[]', space=smem, size = 0x4, offset = 0x4, fixed_abs, tag = 'smem constant byte address 0x4 - core index']
  #allocation1 [shape = 'u32[72,128]{1,0:T(1,128)}', space=vmem, size = 0x9000, scoped, tag = 'internal scratch']
  #allocation2 [shape = 'bf16[4,82,8]{2,1,0:T(8,128)(2,1)}', space=vmem, size = 0x16000, scoped, tag = 'scratch operand']
  %s0 = inlined_call_operand.vmem [shape: bf16[2,4,64,8], index: 0, kind: input, shape index: {}]
  %s1 = inlined_call_operand.vmem [shape: bf16[3,64,1], index: 1, kind: input, shape index: {}]
  %s2 = inlined_call_operand.vmem [shape: bf16[8,8], index: 2, kind: input, shape index: {}]
  %s3 = inlined_call_operand.vmem [shape: f32[1,8], index: 3, kind: input, shape index: {}]
  %s4 = inlined_call_operand.vmem [shape: bf16[3,24,8], index: 4, kind: input, shape index: {}]
  %s5 = inlined_call_operand.vmem [shape: f32[1,8], index: 5, kind: input, shape index: {}]
  %s6 = inlined_call_operand.vmem [shape: bf16[16,128], index: 6, kind: input, shape index: {}]
  %s7 = inlined_call_operand.vmem [shape: f32[1,128], index: 7, kind: input, shape index: {}]
  %s8 = inlined_call_operand.vmem [shape: bf16[2,64,128], index: 8, kind: output, shape index: {}]
  %s9 = sld [smem:[#allocation0]]
  $region65: #{res_block_forward.1} parent=0
    _
  %s11 = ssub.s32 1, %s9
  %s12 = scalar_select 0, %s11, %s9
  loop: start=0, step=1, limit=4
  $region2: #{res_block_forward.1} parent=0 // loop_pre_header
    _
  $region3: #{res_block_forward.1} parent=0 // loop_header
    %s14 = sphi 0, %s18
    %p15 = scmp.ge.s32.totalorder %s14, 4
    %s24 = sphi 0, %s26
    %s27 = sphi 0, %s24
    %s28 = sphi 0, %s27
    %s44 = sphi 0, %s28
    %s48 = sphi 0, %s48
    %s50 = sphi 0, %s48
    %s51 = sphi 0, %s50
    %s65 = sphi 0, %s51
    %s69 = sphi 0, %s69
    %s71 = sphi 0, %s69
    %s72 = sphi 0, %s71
    %s86 = sphi 0, %s72
    %s90 = sphi 0, %s90
    %s92 = sphi 0, %s90
    %s93 = sphi 0, %s92
    %s107 = sphi 0, %s93
    %s111 = sphi 0, %s111
    %s113 = sphi 0, %s111
    %s114 = sphi 0, %s113
    %s128 = sphi 0, %s114
    %s132 = sphi 0, %s132
    %s134 = sphi 0, %s132
    %s135 = sphi 0, %s134
    %s149 = sphi 0, %s135
    %s153 = sphi 0, %s153
    %s155 = sphi 0, %s153
    %s156 = sphi 0, %s155
    %s170 = sphi 0, %s156
    %s174 = sphi 0, %s174
    %s176 = sphi 0, %s174
    %s177 = sphi 0, %s176
    %s191 = sphi 0, %s177
    %s197 = sphi 0, %s199
    %s200 = sphi 0, %s197
    %s201 = sphi 0, %s200
    %s217 = sphi 0, %s201
  $region4: #{res_block_forward.1} parent=0 // loop_header_branch
    %17 = sbr.rel (%p15) target = $region8
  $region5: #{res_block_forward.1} parent=0 // loop_body
    %s19 = ssub.s32 %s14, 1
    %s20 = ssub.s32 %s14, 2
    %s21 = sadd.s32 %s14, 1
    %s22 = ssub.s32 %s14, %s21
    %p23 = scmp.eq.s32.totalorder %s22, 0
    %s25 = sadd.s32 %s24, 1
    %s26 = scalar_select %p23, %s24, %s25
    %p29 = pneg %p23
    %p30 = scmp.eq.s32.totalorder %s14, 1
    %p31 = por %p29, %p30
    %p32 = scmp.ne.s32.totalorder %s24, %s27
    %p33 = scmp.eq.s32.totalorder %s14, 0
    %p34 = por %p32, %p33
    %p35 = scmp.ne.s32.totalorder %s24, %s27
    %p36 = scmp.eq.s32.totalorder %s19, 1
    %p37 = por %p35, %p36
    %p38 = scmp.ne.s32.totalorder %s27, %s28
    %p39 = scmp.eq.s32.totalorder %s19, 0
    %p40 = por %p38, %p39
    %p41 = scmp.ne.s32.totalorder %s27, %s28
    %p42 = scmp.eq.s32.totalorder %s20, 1
    %p43 = por %p41, %p42
    %p45 = scmp.ne.s32.totalorder %s28, %s44
    %p46 = scmp.eq.s32.totalorder %s20, 0
    %p47 = por %p45, %p46
    %s49 = sadd.s32 %s48, 1
    %p52 = scmp.eq.s32.totalorder %s14, 1
    %p53 = scmp.ne.s32.totalorder %s48, %s50
    %p54 = scmp.eq.s32.totalorder %s14, 0
    %p55 = por %p53, %p54
    %p56 = scmp.ne.s32.totalorder %s48, %s50
    %p57 = scmp.eq.s32.totalorder %s19, 1
    %p58 = por %p56, %p57
    %p59 = scmp.ne.s32.totalorder %s50, %s51
    %p60 = scmp.eq.s32.totalorder %s19, 0
    %p61 = por %p59, %p60
    %p62 = scmp.ne.s32.totalorder %s50, %s51
    %p63 = scmp.eq.s32.totalorder %s20, 1
    %p64 = por %p62, %p63
    %p66 = scmp.ne.s32.totalorder %s51, %s65
    %p67 = scmp.eq.s32.totalorder %s20, 0
    %p68 = por %p66, %p67
    %s70 = sadd.s32 %s69, 1
    %p73 = scmp.eq.s32.totalorder %s14, 1
    %p74 = scmp.ne.s32.totalorder %s69, %s71
    %p75 = scmp.eq.s32.totalorder %s14, 0
    %p76 = por %p74, %p75
    %p77 = scmp.ne.s32.totalorder %s69, %s71
    %p78 = scmp.eq.s32.totalorder %s19, 1
    %p79 = por %p77, %p78
    %p80 = scmp.ne.s32.totalorder %s71, %s72
    %p81 = scmp.eq.s32.totalorder %s19, 0
    %p82 = por %p80, %p81
    %p83 = scmp.ne.s32.totalorder %s71, %s72
    %p84 = scmp.eq.s32.totalorder %s20, 1
    %p85 = por %p83, %p84
    %p87 = scmp.ne.s32.totalorder %s72, %s86
    %p88 = scmp.eq.s32.totalorder %s20, 0
    %p89 = por %p87, %p88
    %s91 = sadd.s32 %s90, 1
    %p94 = scmp.eq.s32.totalorder %s14, 1
    %p95 = scmp.ne.s32.totalorder %s90, %s92
    %p96 = scmp.eq.s32.totalorder %s14, 0
    %p97 = por %p95, %p96
    %p98 = scmp.ne.s32.totalorder %s90, %s92
    %p99 = scmp.eq.s32.totalorder %s19, 1
    %p100 = por %p98, %p99
    %p101 = scmp.ne.s32.totalorder %s92, %s93
    %p102 = scmp.eq.s32.totalorder %s19, 0
    %p103 = por %p101, %p102
    %p104 = scmp.ne.s32.totalorder %s92, %s93
    %p105 = scmp.eq.s32.totalorder %s20, 1
    %p106 = por %p104, %p105
    %p108 = scmp.ne.s32.totalorder %s93, %s107
    %p109 = scmp.eq.s32.totalorder %s20, 0
    %p110 = por %p108, %p109
    %s112 = sadd.s32 %s111, 1
    %p115 = scmp.eq.s32.totalorder %s14, 1
    %p116 = scmp.ne.s32.totalorder %s111, %s113
    %p117 = scmp.eq.s32.totalorder %s14, 0
    %p118 = por %p116, %p117
    %p119 = scmp.ne.s32.totalorder %s111, %s113
    %p120 = scmp.eq.s32.totalorder %s19, 1
    %p121 = por %p119, %p120
    %p122 = scmp.ne.s32.totalorder %s113, %s114
    %p123 = scmp.eq.s32.totalorder %s19, 0
    %p124 = por %p122, %p123
    %p125 = scmp.ne.s32.totalorder %s113, %s114
    %p126 = scmp.eq.s32.totalorder %s20, 1
    %p127 = por %p125, %p126
    %p129 = scmp.ne.s32.totalorder %s114, %s128
    %p130 = scmp.eq.s32.totalorder %s20, 0
    %p131 = por %p129, %p130
    %s133 = sadd.s32 %s132, 1
    %p136 = scmp.eq.s32.totalorder %s14, 1
    %p137 = scmp.ne.s32.totalorder %s132, %s134
    %p138 = scmp.eq.s32.totalorder %s14, 0
    %p139 = por %p137, %p138
    %p140 = scmp.ne.s32.totalorder %s132, %s134
    %p141 = scmp.eq.s32.totalorder %s19, 1
    %p142 = por %p140, %p141
    %p143 = scmp.ne.s32.totalorder %s134, %s135
    %p144 = scmp.eq.s32.totalorder %s19, 0
    %p145 = por %p143, %p144
    %p146 = scmp.ne.s32.totalorder %s134, %s135
    %p147 = scmp.eq.s32.totalorder %s20, 1
    %p148 = por %p146, %p147
    %p150 = scmp.ne.s32.totalorder %s135, %s149
    %p151 = scmp.eq.s32.totalorder %s20, 0
    %p152 = por %p150, %p151
    %s154 = sadd.s32 %s153, 1
    %p157 = scmp.eq.s32.totalorder %s14, 1
    %p158 = scmp.ne.s32.totalorder %s153, %s155
    %p159 = scmp.eq.s32.totalorder %s14, 0
    %p160 = por %p158, %p159
    %p161 = scmp.ne.s32.totalorder %s153, %s155
    %p162 = scmp.eq.s32.totalorder %s19, 1
    %p163 = por %p161, %p162
    %p164 = scmp.ne.s32.totalorder %s155, %s156
    %p165 = scmp.eq.s32.totalorder %s19, 0
    %p166 = por %p164, %p165
    %p167 = scmp.ne.s32.totalorder %s155, %s156
    %p168 = scmp.eq.s32.totalorder %s20, 1
    %p169 = por %p167, %p168
    %p171 = scmp.ne.s32.totalorder %s156, %s170
    %p172 = scmp.eq.s32.totalorder %s20, 0
    %p173 = por %p171, %p172
    %s175 = sadd.s32 %s174, 1
    %p178 = scmp.eq.s32.totalorder %s14, 1
    %p179 = scmp.ne.s32.totalorder %s174, %s176
    %p180 = scmp.eq.s32.totalorder %s14, 0
    %p181 = por %p179, %p180
    %p182 = scmp.ne.s32.totalorder %s174, %s176
    %p183 = scmp.eq.s32.totalorder %s19, 1
    %p184 = por %p182, %p183
    %p185 = scmp.ne.s32.totalorder %s176, %s177
    %p186 = scmp.eq.s32.totalorder %s19, 0
    %p187 = por %p185, %p186
    %p188 = scmp.ne.s32.totalorder %s176, %s177
    %p189 = scmp.eq.s32.totalorder %s20, 1
    %p190 = por %p188, %p189
    %p192 = scmp.ne.s32.totalorder %s177, %s191
    %p193 = scmp.eq.s32.totalorder %s20, 0
    %p194 = por %p192, %p193
    %s195 = ssub.s32 %s14, %s21
    %p196 = scmp.eq.s32.totalorder %s195, 0
    %s198 = sadd.s32 %s197, 1
    %s199 = scalar_select %p196, %s197, %s198
    %p202 = pneg %p196
    %p203 = scmp.eq.s32.totalorder %s14, 1
    %p204 = por %p202, %p203
    %p205 = scmp.ne.s32.totalorder %s197, %s200
    %p206 = scmp.eq.s32.totalorder %s14, 0
    %p207 = por %p205, %p206
    %p208 = scmp.ne.s32.totalorder %s197, %s200
    %p209 = scmp.eq.s32.totalorder %s19, 1
    %p210 = por %p208, %p209
    %p211 = scmp.ne.s32.totalorder %s200, %s201
    %p212 = scmp.eq.s32.totalorder %s19, 0
    %p213 = por %p211, %p212
    %p214 = scmp.ne.s32.totalorder %s200, %s201
    %p215 = scmp.eq.s32.totalorder %s20, 1
    %p216 = por %p214, %p215
    %p218 = scmp.ne.s32.totalorder %s201, %s217
    %p219 = scmp.eq.s32.totalorder %s20, 0
    %p220 = por %p218, %p219
    %p221 = scmp.le.s32.totalorder 1, %s14
    %p222 = scmp.lt.s32.totalorder %s14, 3
    %p223 = pnand %p221, %p222
    %p224 = pneg %p223
    // Predicated region
    $region9: #{res_block_forward.1} parent=5 // pred_check
      _
    $region10: #{res_block_forward.1} parent=5 // pred_check_branch
      %226 = sbr.rel (%p223) target = $region12
    $region11: #{res_block_forward.1} parent=5 // pred_region
      %s227 = ssub.s32 %s14, 1
      // Predicated region
      $region13: #{res_block_forward.1} parent=11 // pred_check
        %p228 = pneg %p61
      $region14: #{res_block_forward.1} parent=11 // pred_check_branch
        %230 = sbr.rel (%p228) target = $region16
      $region15: #{res_block_forward.1} parent=11 // pred_region
        _
      $region16: #{res_block_forward.1} parent=11 // pred_fallthru
        _
      // Predicated region
      $region17: #{res_block_forward.1} parent=11 // pred_check
        %p231 = pneg %p82
      $region18: #{res_block_forward.1} parent=11 // pred_check_branch
        %233 = sbr.rel (%p231) target = $region20
      $region19: #{res_block_forward.1} parent=11 // pred_region
        _
      $region20: #{res_block_forward.1} parent=11 // pred_fallthru
        _
      // Predicated region
      $region21: #{res_block_forward.1} parent=11 // pred_check
        %p234 = pneg %p103
      $region22: #{res_block_forward.1} parent=11 // pred_check_branch
        %236 = sbr.rel (%p234) target = $region24
      $region23: #{res_block_forward.1} parent=11 // pred_region
        _
      $region24: #{res_block_forward.1} parent=11 // pred_fallthru
        _
      // Predicated region
      $region25: #{res_block_forward.1} parent=11 // pred_check
        %p237 = pneg %p124
      $region26: #{res_block_forward.1} parent=11 // pred_check_branch
        %239 = sbr.rel (%p237) target = $region28
      $region27: #{res_block_forward.1} parent=11 // pred_region
        _
      $region28: #{res_block_forward.1} parent=11 // pred_fallthru
        _
      // Predicated region
      $region29: #{res_block_forward.1} parent=11 // pred_check
        %p240 = pneg %p145
      $region30: #{res_block_forward.1} parent=11 // pred_check_branch
        %242 = sbr.rel (%p240) target = $region32
      $region31: #{res_block_forward.1} parent=11 // pred_region
        _
      $region32: #{res_block_forward.1} parent=11 // pred_fallthru
        _
      // Predicated region
      $region33: #{res_block_forward.1} parent=11 // pred_check
        %p243 = pneg %p166
      $region34: #{res_block_forward.1} parent=11 // pred_check_branch
        %245 = sbr.rel (%p243) target = $region36
      $region35: #{res_block_forward.1} parent=11 // pred_region
        _
      $region36: #{res_block_forward.1} parent=11 // pred_fallthru
        _
      // Predicated region
      $region37: #{res_block_forward.1} parent=11 // pred_check
        %p246 = pneg %p187
      $region38: #{res_block_forward.1} parent=11 // pred_check_branch
        %248 = sbr.rel (%p246) target = $region40
      $region39: #{res_block_forward.1} parent=11 // pred_region
        _
      $region40: #{res_block_forward.1} parent=11 // pred_fallthru
        _
    $region12: #{res_block_forward.1} parent=5 // pred_fallthru
      _
    %p249 = scmp.lt.s32.totalorder %s14, 2
    // Predicated region
    $region41: #{res_block_forward.1} parent=5 // pred_check
      %p250 = pneg %p249
    $region42: #{res_block_forward.1} parent=5 // pred_check_branch
      %252 = sbr.rel (%p250) target = $region44
    $region43: #{res_block_forward.1} parent=5 // pred_region
      // Predicated region
      $region45: #{res_block_forward.1} parent=43 // pred_check
        %p253 = pneg %p34
      $region46: #{res_block_forward.1} parent=43 // pred_check_branch
        %255 = sbr.rel (%p253) target = $region48
      $region47: #{res_block_forward.1} parent=43 // pred_region
        %p256 = scmp.lt.s32.totalorder %s14, 1
        %s257 = scalar_select %p256, %s14, 1
        %s258 = smul.addr %s257, 32
        %s259 = smul.addr %s258, 4
        %s260 = scalar_lea.vmem %s0, %s259
      $region48: #{res_block_forward.1} parent=43 // pred_fallthru
        _
    $region44: #{res_block_forward.1} parent=5 // pred_fallthru
      _
    %p261 = scmp.le.s32.totalorder 1, %s14
    %p262 = scmp.lt.s32.totalorder %s14, 3
    %p263 = pnand %p261, %p262
    %p264 = pneg %p263
    // Predicated region
    $region49: #{res_block_forward.1} parent=5 // pred_check
      _
    $region50: #{res_block_forward.1} parent=5 // pred_check_branch
      %266 = sbr.rel (%p263) target = $region52
    $region51: #{res_block_forward.1} parent=5 // pred_region
      %s267 = ssub.s32 %s14, 1
      %p268 = scmp.lt.s32.totalorder %s19, 1
      %s269 = scalar_select %p268, %s19, 1
      %s270 = smul.addr %s269, 32
      %s271 = smul.addr %s270, 4
      %s272 = scalar_lea.vmem %s0, %s271
      %p273 = pneg %p40
      %p274 = pneg %p37
      %p275 = pneg %p61
      %p276 = pneg %p58
      %p277 = pneg %p82
      %p278 = pneg %p79
      %p279 = pneg %p103
      %p280 = pneg %p100
      %p281 = pneg %p124
      %p282 = pneg %p121
      %p283 = pneg %p145
      %p284 = pneg %p142
      %p285 = pneg %p166
      %p286 = pneg %p163
      %p287 = pneg %p187
      %p288 = pneg %p184
      %p289 = pneg %p213
      %p290 = pneg %p210
      %p291 = scmp.lt.s32.totalorder %s19, 1
      %s292 = scalar_select %p291, %s19, 1
      %s293 = smul.addr %s292, 8
      %s294 = smul.addr %s293, 4
      %s295 = scalar_lea.vmem %s8, %s294
      %p296 = scmp.lt.s32.totalorder %s19, 1
      %s297 = scalar_select %p296, %s19, 1
      %s298 = smul.addr %s297, 32
      %s299 = smul.addr %s298, 4
      %s300 = scalar_lea.vmem %s0, %s299
      %p301 = scmp.lt.s32.totalorder %s19, 1
      %s302 = scalar_select %p301, %s19, 1
      %s303 = smul.addr %s302, 8
      %s304 = smul.addr %s303, 4
      %s305 = scalar_lea.vmem %s8, %s304
      %vm307 = vcmask 60416
      %308 = vst.msk [vmem:[#allocation2] sm:$0xf] %vm307, 0
      %vm309 = vcmask 57344
      %vm310 = vsmask.f32 256
      %vm311 = vmand %vm309, %vm310
      %v312 = vld [vmem:[#allocation2 + $0x4] sm:$0x1]
      %v313 = vsel %vm311, 0, %v312
      %314 = vst [vmem:[#allocation2 + $0x4] sm:$0x1] %v313
      %vm315 = vcmask 60416
      %vm316 = vsmask.f32 7938
      %vm317 = vmand %vm315, %vm316
      %v318 = vld [vmem:[#allocation2 + $0x24] sm:$0xf]
      %v319 = vsel %vm317, 0, %v318
      %320 = vst [vmem:[#allocation2 + $0x24] sm:$0xf] %v319
      %vm321 = vcmask 57344
      %322 = vst.msk [vmem:[#allocation2 + $0x28] sm:$0x1] %vm321, 0
      %s323 = scalar_lea.vmem [#allocation2], 44
      %324 = vst.msk [vmem:[%s323] sm:$0xf] %vm307, 0
      %v325 = vld [vmem:[%s323 + $0x4] sm:$0x1]
      %v326 = vsel %vm311, 0, %v325
      %327 = vst [vmem:[%s323 + $0x4] sm:$0x1] %v326
      %v328 = vld [vmem:[%s323 + $0x24] sm:$0xf]
      %v329 = vsel %vm317, 0, %v328
      %330 = vst [vmem:[%s323 + $0x24] sm:$0xf] %v329
      %331 = vst.msk [vmem:[%s323 + $0x28] sm:$0x1] %vm321, 0
      %s332 = scalar_lea.vmem [#allocation2], 88
      %333 = vst.msk [vmem:[%s332] sm:$0xf] %vm307, 0
      %v334 = vld [vmem:[%s332 + $0x4] sm:$0x1]
      %v335 = vsel %vm311, 0, %v334
      %336 = vst [vmem:[%s332 + $0x4] sm:$0x1] %v335
      %v337 = vld [vmem:[%s332 + $0x24] sm:$0xf]
      %v338 = vsel %vm317, 0, %v337
      %339 = vst [vmem:[%s332 + $0x24] sm:$0xf] %v338
      %340 = vst.msk [vmem:[%s332 + $0x28] sm:$0x1] %vm321, 0
      %s341 = scalar_lea.vmem [#allocation2], 132
      %342 = vst.msk [vmem:[%s341] sm:$0xf] %vm307, 0
      %v343 = vld [vmem:[%s341 + $0x4] sm:$0x1]
      %v344 = vsel %vm311, 0, %v343
      %345 = vst [vmem:[%s341 + $0x4] sm:$0x1] %v344
      %v346 = vld [vmem:[%s341 + $0x24] sm:$0xf]
      %v347 = vsel %vm317, 0, %v346
      %348 = vst [vmem:[%s341 + $0x24] sm:$0xf] %v347
      %349 = vst.msk [vmem:[%s341 + $0x28] sm:$0x1] %vm321, 0
      %v350 = vld [vmem:[%s300] sm:$0xf]
      %v351 = vld [vmem:[%s300 + $0x4] sm:$0xf]
      %v352 = vld [vmem:[%s300 + $0x8] sm:$0xf]
      %v353 = vld [vmem:[%s300 + $0xc] sm:$0xf]
      %v354 = vld [vmem:[%s300 + $0x10] sm:$0xf]
      %v355 = vld [vmem:[%s300 + $0x14] sm:$0xf]
      %v356 = vld [vmem:[%s300 + $0x18] sm:$0xf]
      %v357 = vld [vmem:[%s300 + $0x1c] sm:$0xf]
      %v358 = vld [vmem:[%s2] sm:$0xf]
      %v359 = vld [vmem:[%s3] sm:$0x1]
      %v361 = vperm.slane %v359, 0
      %v371 = vunpack.c.l.b16 %v350
      %v372 = vunpack.c.l.b16 %v351
      %v373 = vunpack.c.l.b16 %v352
      %v374 = vunpack.c.l.b16 %v353
      %v375 = vunpack.c.l.b16 %v354
      %v376 = vunpack.c.l.b16 %v355
      %v377 = vunpack.c.l.b16 %v356
      %v378 = vunpack.c.l.b16 %v357
      %v379 = vpack.c.b16 %v372, %v371
      %v380 = vpack.c.b16 %v374, %v373
      %v381 = vpack.c.b16 %v376, %v375
      %v382 = vpack.c.b16 %v378, %v377
      %vm383 = vcmask 64512
      %v385 = vsel %vm383, %v379, 0
      %v388 = vsel %vm383, %v380, 0
      %v391 = vsel %vm383, %v381, 0
      %v394 = vsel %vm383, %v382, 0
      %vm396 = vcmask 1043456
      %v398 = vsel %vm396, %v358, 0
      %400 = vmatpush.bf16.msra.mxu0 0
      %401 = vmatpush.bf16.msra.mxu0 0
      %402 = vmatpush.bf16.msra.mxu0 0
      %403 = vmatpush.bf16.msra.mxu0 0
      %404 = vmatpush.bf16.msra.mxu0 0
      %405 = vmatpush.bf16.msra.mxu0 0
      %406 = vmatpush.bf16.msra.mxu0 0
      %407 = vmatpush.bf16.msra.mxu0 %v398
      %408 = vmatmul.bf16.gmra.mxu0 %v385
      %v409 = vpop.f32.mrf.mxu0
      %v410 = vadd.f32 %v361, %v409
      %v411 = vpop.f32.mrf.mxu0
      %v412 = vadd.f32 %v361, %v411
      %413 = vmatmul.bf16.gmra.mxu0 %v388
      %v414 = vpop.f32.mrf.mxu0
      %v415 = vadd.f32 %v361, %v414
      %v416 = vpop.f32.mrf.mxu0
      %v417 = vadd.f32 %v361, %v416
      %418 = vmatmul.bf16.gmra.mxu0 %v391
      %v419 = vpop.f32.mrf.mxu0
      %v420 = vadd.f32 %v361, %v419
      %v421 = vpop.f32.mrf.mxu0
      %v422 = vadd.f32 %v361, %v421
      %423 = vmatmul.bf16.gmra.mxu0 %v394
      %v424 = vpop.f32.mrf.mxu0
      %v425 = vadd.f32 %v361, %v424
      %v426 = vpop.f32.mrf.mxu0
      %v427 = vadd.f32 %v361, %v426
      %428 = vdwg.mxu0
      %v429 = vmax.f32 %v410, 0.0
      %v430 = vmax.f32 %v412, 0.0
      %v431 = vmax.f32 %v415, 0.0
      %v432 = vmax.f32 %v417, 0.0
      %v433 = vmax.f32 %v420, 0.0
      %v434 = vmax.f32 %v422, 0.0
      %v435 = vmax.f32 %v425, 0.0
      %v436 = vmax.f32 %v427, 0.0
      %v437 = vpack.c.bf16 %v429, %v429
      %v438 = vpack.c.bf16 %v430, %v430
      %v439 = vpack.c.bf16 %v431, %v431
      %v440 = vpack.c.bf16 %v432, %v432
      %v441 = vpack.c.bf16 %v433, %v433
      %v442 = vpack.c.bf16 %v434, %v434
      %v443 = vpack.c.bf16 %v435, %v435
      %v444 = vpack.c.bf16 %v436, %v436
      %vm445 = vsmask.f32 4368
      %vm446 = vmor %vm310, %vm445
      %v448 = vshrl.u32 %v437, 16
      %v450 = vrot.slane %v448, 7
      %v451 = vshll.u32 %v437, 16
      %v453 = vor.u32 %v450, %v451
      %v454 = vrot.slane %v450, 4
      %v456 = vshrl.u32 %v438, 16
      %v458 = vrot.slane %v456, 7
      %v459 = vshll.u32 %v438, 16
      %v461 = vor.u32 %v458, %v459
      %v462 = vsel %vm446, %v454, %v461
      %v463 = vrot.slane %v458, 4
      %v465 = vshrl.u32 %v439, 16
      %v467 = vrot.slane %v465, 7
      %v468 = vshll.u32 %v439, 16
      %v470 = vor.u32 %v467, %v468
      %v471 = vsel %vm446, %v463, %v470
      %v472 = vrot.slane %v467, 4
      %v474 = vshrl.u32 %v440, 16
      %v476 = vrot.slane %v474, 7
      %v477 = vshll.u32 %v440, 16
      %v479 = vor.u32 %v476, %v477
      %v480 = vsel %vm446, %v472, %v479
      %v481 = vrot.slane %v476, 4
      %v483 = vshrl.u32 %v441, 16
      %v485 = vrot.slane %v483, 7
      %v486 = vshll.u32 %v441, 16
      %v488 = vor.u32 %v485, %v486
      %v489 = vsel %vm446, %v481, %v488
      %v490 = vrot.slane %v485, 4
      %v492 = vshrl.u32 %v442, 16
      %v494 = vrot.slane %v492, 7
      %v495 = vshll.u32 %v442, 16
      %v497 = vor.u32 %v494, %v495
      %v498 = vsel %vm446, %v490, %v497
      %v499 = vrot.slane %v494, 4
      %v501 = vshrl.u32 %v443, 16
      %v503 = vrot.slane %v501, 7
      %v504 = vshll.u32 %v443, 16
      %v506 = vor.u32 %v503, %v504
      %v507 = vsel %vm446, %v499, %v506
      %v508 = vrot.slane %v503, 4
      %v510 = vshrl.u32 %v444, 16
      %v512 = vrot.slane %v510, 7
      %v513 = vshll.u32 %v444, 16
      %v515 = vor.u32 %v512, %v513
      %v516 = vsel %vm446, %v508, %v515
      %v517 = vrot.slane %v512, 4
      %v527 = vld [vmem:[#allocation2 + $0x4] sm:$0xf]
      %v528 = vsel %vm317, %v453, %v527
      %529 = vst [vmem:[#allocation2 + $0x4] sm:$0xf] %v528
      %530 = vst.msk [vmem:[#allocation2 + $0x8] sm:$0xf] %vm307, %v462
      %531 = vst.msk [vmem:[#allocation2 + $0xc] sm:$0xf] %vm307, %v471
      %532 = vst.msk [vmem:[#allocation2 + $0x10] sm:$0xf] %vm307, %v480
      %533 = vst.msk [vmem:[#allocation2 + $0x14] sm:$0xf] %vm307, %v489
      %534 = vst.msk [vmem:[#allocation2 + $0x18] sm:$0xf] %vm307, %v498
      %535 = vst.msk [vmem:[#allocation2 + $0x1c] sm:$0xf] %vm307, %v507
      %536 = vst.msk [vmem:[#allocation2 + $0x20] sm:$0xf] %vm307, %v516
      %v537 = vld [vmem:[#allocation2 + $0x24] sm:$0x1]
      %v538 = vsel %vm311, %v517, %v537
      %539 = vst [vmem:[#allocation2 + $0x24] sm:$0x1] %v538
      %s540 = scalar_lea.vmem %s300, 32
      %v541 = vld [vmem:[%s540] sm:$0xf]
      %v542 = vld [vmem:[%s540 + $0x4] sm:$0xf]
      %v543 = vld [vmem:[%s540 + $0x8] sm:$0xf]
      %v544 = vld [vmem:[%s540 + $0xc] sm:$0xf]
      %v545 = vld [vmem:[%s540 + $0x10] sm:$0xf]
      %v546 = vld [vmem:[%s540 + $0x14] sm:$0xf]
      %v547 = vld [vmem:[%s540 + $0x18] sm:$0xf]
      %v548 = vld [vmem:[%s540 + $0x1c] sm:$0xf]
      %v549 = vld [vmem:[%s2] sm:$0xf]
      %v550 = vld [vmem:[%s3] sm:$0x1]
      %v552 = vperm.slane %v550, 0
      %v562 = vunpack.c.l.b16 %v541
      %v563 = vunpack.c.l.b16 %v542
      %v564 = vunpack.c.l.b16 %v543
      %v565 = vunpack.c.l.b16 %v544
      %v566 = vunpack.c.l.b16 %v545
      %v567 = vunpack.c.l.b16 %v546
      %v568 = vunpack.c.l.b16 %v547
      %v569 = vunpack.c.l.b16 %v548
      %v570 = vpack.c.b16 %v563, %v562
      %v571 = vpack.c.b16 %v565, %v564
      %v572 = vpack.c.b16 %v567, %v566
      %v573 = vpack.c.b16 %v569, %v568
      %v575 = vsel %vm383, %v570, 0
      %v578 = vsel %vm383, %v571, 0
      %v581 = vsel %vm383, %v572, 0
      %v584 = vsel %vm383, %v573, 0
      %v587 = vsel %vm396, %v549, 0
      %589 = vmatpush.bf16.msra.mxu0 0
      %590 = vmatpush.bf16.msra.mxu0 0
      %591 = vmatpush.bf16.msra.mxu0 0
      %592 = vmatpush.bf16.msra.mxu0 0
      %593 = vmatpush.bf16.msra.mxu0 0
      %594 = vmatpush.bf16.msra.mxu0 0
      %595 = vmatpush.bf16.msra.mxu0 0
      %596 = vmatpush.bf16.msra.mxu0 %v587
      %597 = vmatmul.bf16.gmra.mxu0 %v575
      %v598 = vpop.f32.mrf.mxu0
      %v599 = vadd.f32 %v552, %v598
      %v600 = vpop.f32.mrf.mxu0
      %v601 = vadd.f32 %v552, %v600
      %602 = vmatmul.bf16.gmra.mxu0 %v578
      %v603 = vpop.f32.mrf.mxu0
      %v604 = vadd.f32 %v552, %v603
      %v605 = vpop.f32.mrf.mxu0
      %v606 = vadd.f32 %v552, %v605
      %607 = vmatmul.bf16.gmra.mxu0 %v581
      %v608 = vpop.f32.mrf.mxu0
      %v609 = vadd.f32 %v552, %v608
      %v610 = vpop.f32.mrf.mxu0
      %v611 = vadd.f32 %v552, %v610
      %612 = vmatmul.bf16.gmra.mxu0 %v584
      %v613 = vpop.f32.mrf.mxu0
      %v614 = vadd.f32 %v552, %v613
      %v615 = vpop.f32.mrf.mxu0
      %v616 = vadd.f32 %v552, %v615
      %617 = vdwg.mxu0
      %v618 = vmax.f32 %v599, 0.0
      %v619 = vmax.f32 %v601, 0.0
      %v620 = vmax.f32 %v604, 0.0
      %v621 = vmax.f32 %v606, 0.0
      %v622 = vmax.f32 %v609, 0.0
      %v623 = vmax.f32 %v611, 0.0
      %v624 = vmax.f32 %v614, 0.0
      %v625 = vmax.f32 %v616, 0.0
      %v626 = vpack.c.bf16 %v618, %v618
      %v627 = vpack.c.bf16 %v619, %v619
      %v628 = vpack.c.bf16 %v620, %v620
      %v629 = vpack.c.bf16 %v621, %v621
      %v630 = vpack.c.bf16 %v622, %v622
      %v631 = vpack.c.bf16 %v623, %v623
      %v632 = vpack.c.bf16 %v624, %v624
      %v633 = vpack.c.bf16 %v625, %v625
      %v635 = vshrl.u32 %v626, 16
      %v637 = vrot.slane %v635, 7
      %v638 = vshll.u32 %v626, 16
      %v640 = vor.u32 %v637, %v638
      %v641 = vrot.slane %v637, 4
      %v643 = vshrl.u32 %v627, 16
      %v645 = vrot.slane %v643, 7
      %v646 = vshll.u32 %v627, 16
      %v648 = vor.u32 %v645, %v646
      %v649 = vsel %vm446, %v641, %v648
      %v650 = vrot.slane %v645, 4
      %v652 = vshrl.u32 %v628, 16
      %v654 = vrot.slane %v652, 7
      %v655 = vshll.u32 %v628, 16
      %v657 = vor.u32 %v654, %v655
      %v658 = vsel %vm446, %v650, %v657
      %v659 = vrot.slane %v654, 4
      %v661 = vshrl.u32 %v629, 16
      %v663 = vrot.slane %v661, 7
      %v664 = vshll.u32 %v629, 16
      %v666 = vor.u32 %v663, %v664
      %v667 = vsel %vm446, %v659, %v666
      %v668 = vrot.slane %v663, 4
      %v670 = vshrl.u32 %v630, 16
      %v672 = vrot.slane %v670, 7
      %v673 = vshll.u32 %v630, 16
      %v675 = vor.u32 %v672, %v673
      %v676 = vsel %vm446, %v668, %v675
      %v677 = vrot.slane %v672, 4
      %v679 = vshrl.u32 %v631, 16
      %v681 = vrot.slane %v679, 7
      %v682 = vshll.u32 %v631, 16
      %v684 = vor.u32 %v681, %v682
      %v685 = vsel %vm446, %v677, %v684
      %v686 = vrot.slane %v681, 4
      %v688 = vshrl.u32 %v632, 16
      %v690 = vrot.slane %v688, 7
      %v691 = vshll.u32 %v632, 16
      %v693 = vor.u32 %v690, %v691
      %v694 = vsel %vm446, %v686, %v693
      %v695 = vrot.slane %v690, 4
      %v697 = vshrl.u32 %v633, 16
      %v699 = vrot.slane %v697, 7
      %v700 = vshll.u32 %v633, 16
      %v702 = vor.u32 %v699, %v700
      %v703 = vsel %vm446, %v695, %v702
      %v704 = vrot.slane %v699, 4
      %v714 = vld [vmem:[%s323 + $0x4] sm:$0xf]
      %v715 = vsel %vm317, %v640, %v714
      %716 = vst [vmem:[%s323 + $0x4] sm:$0xf] %v715
      %717 = vst.msk [vmem:[%s323 + $0x8] sm:$0xf] %vm307, %v649
      %718 = vst.msk [vmem:[%s323 + $0xc] sm:$0xf] %vm307, %v658
      %719 = vst.msk [vmem:[%s323 + $0x10] sm:$0xf] %vm307, %v667
      %720 = vst.msk [vmem:[%s323 + $0x14] sm:$0xf] %vm307, %v676
      %721 = vst.msk [vmem:[%s323 + $0x18] sm:$0xf] %vm307, %v685
      %722 = vst.msk [vmem:[%s323 + $0x1c] sm:$0xf] %vm307, %v694
      %723 = vst.msk [vmem:[%s323 + $0x20] sm:$0xf] %vm307, %v703
      %v724 = vld [vmem:[%s323 + $0x24] sm:$0x1]
      %v725 = vsel %vm311, %v704, %v724
      %726 = vst [vmem:[%s323 + $0x24] sm:$0x1] %v725
      %s727 = scalar_lea.vmem %s300, 64
      %v728 = vld [vmem:[%s727] sm:$0xf]
      %v729 = vld [vmem:[%s727 + $0x4] sm:$0xf]
      %v730 = vld [vmem:[%s727 + $0x8] sm:$0xf]
      %v731 = vld [vmem:[%s727 + $0xc] sm:$0xf]
      %v732 = vld [vmem:[%s727 + $0x10] sm:$0xf]
      %v733 = vld [vmem:[%s727 + $0x14] sm:$0xf]
      %v734 = vld [vmem:[%s727 + $0x18] sm:$0xf]
      %v735 = vld [vmem:[%s727 + $0x1c] sm:$0xf]
      %v736 = vld [vmem:[%s2] sm:$0xf]
      %v737 = vld [vmem:[%s3] sm:$0x1]
      %v739 = vperm.slane %v737, 0
      %v749 = vunpack.c.l.b16 %v728
      %v750 = vunpack.c.l.b16 %v729
      %v751 = vunpack.c.l.b16 %v730
      %v752 = vunpack.c.l.b16 %v731
      %v753 = vunpack.c.l.b16 %v732
      %v754 = vunpack.c.l.b16 %v733
      %v755 = vunpack.c.l.b16 %v734
      %v756 = vunpack.c.l.b16 %v735
      %v757 = vpack.c.b16 %v750, %v749
      %v758 = vpack.c.b16 %v752, %v751
      %v759 = vpack.c.b16 %v754, %v753
      %v760 = vpack.c.b16 %v756, %v755
      %v762 = vsel %vm383, %v757, 0
      %v765 = vsel %vm383, %v758, 0
      %v768 = vsel %vm383, %v759, 0
      %v771 = vsel %vm383, %v760, 0
      %v774 = vsel %vm396, %v736, 0
      %776 = vmatpush.bf16.msra.mxu0 0
      %777 = vmatpush.bf16.msra.mxu0 0
      %778 = vmatpush.bf16.msra.mxu0 0
      %779 = vmatpush.bf16.msra.mxu0 0
      %780 = vmatpush.bf16.msra.mxu0 0
      %781 = vmatpush.bf16.msra.mxu0 0
      %782 = vmatpush.bf16.msra.mxu0 0
      %783 = vmatpush.bf16.msra.mxu0 %v774
      %784 = vmatmul.bf16.gmra.mxu0 %v762
      %v785 = vpop.f32.mrf.mxu0
      %v786 = vadd.f32 %v739, %v785
      %v787 = vpop.f32.mrf.mxu0
      %v788 = vadd.f32 %v739, %v787
      %789 = vmatmul.bf16.gmra.mxu0 %v765
      %v790 = vpop.f32.mrf.mxu0
      %v791 = vadd.f32 %v739, %v790
      %v792 = vpop.f32.mrf.mxu0
      %v793 = vadd.f32 %v739, %v792
      %794 = vmatmul.bf16.gmra.mxu0 %v768
      %v795 = vpop.f32.mrf.mxu0
      %v796 = vadd.f32 %v739, %v795
      %v797 = vpop.f32.mrf.mxu0
      %v798 = vadd.f32 %v739, %v797
      %799 = vmatmul.bf16.gmra.mxu0 %v771
      %v800 = vpop.f32.mrf.mxu0
      %v801 = vadd.f32 %v739, %v800
      %v802 = vpop.f32.mrf.mxu0
      %v803 = vadd.f32 %v739, %v802
      %804 = vdwg.mxu0
      %v805 = vmax.f32 %v786, 0.0
      %v806 = vmax.f32 %v788, 0.0
      %v807 = vmax.f32 %v791, 0.0
      %v808 = vmax.f32 %v793, 0.0
      %v809 = vmax.f32 %v796, 0.0
      %v810 = vmax.f32 %v798, 0.0
      %v811 = vmax.f32 %v801, 0.0
      %v812 = vmax.f32 %v803, 0.0
      %v813 = vpack.c.bf16 %v805, %v805
      %v814 = vpack.c.bf16 %v806, %v806
      %v815 = vpack.c.bf16 %v807, %v807
      %v816 = vpack.c.bf16 %v808, %v808
      %v817 = vpack.c.bf16 %v809, %v809
      %v818 = vpack.c.bf16 %v810, %v810
      %v819 = vpack.c.bf16 %v811, %v811
      %v820 = vpack.c.bf16 %v812, %v812
      %v822 = vshrl.u32 %v813, 16
      %v824 = vrot.slane %v822, 7
      %v825 = vshll.u32 %v813, 16
      %v827 = vor.u32 %v824, %v825
      %v828 = vrot.slane %v824, 4
      %v830 = vshrl.u32 %v814, 16
      %v832 = vrot.slane %v830, 7
      %v833 = vshll.u32 %v814, 16
      %v835 = vor.u32 %v832, %v833
      %v836 = vsel %vm446, %v828, %v835
      %v837 = vrot.slane %v832, 4
      %v839 = vshrl.u32 %v815, 16
      %v841 = vrot.slane %v839, 7
      %v842 = vshll.u32 %v815, 16
      %v844 = vor.u32 %v841, %v842
      %v845 = vsel %vm446, %v837, %v844
      %v846 = vrot.slane %v841, 4
      %v848 = vshrl.u32 %v816, 16
      %v850 = vrot.slane %v848, 7
      %v851 = vshll.u32 %v816, 16
      %v853 = vor.u32 %v850, %v851
      %v854 = vsel %vm446, %v846, %v853
      %v855 = vrot.slane %v850, 4
      %v857 = vshrl.u32 %v817, 16
      %v859 = vrot.slane %v857, 7
      %v860 = vshll.u32 %v817, 16
      %v862 = vor.u32 %v859, %v860
      %v863 = vsel %vm446, %v855, %v862
      %v864 = vrot.slane %v859, 4
      %v866 = vshrl.u32 %v818, 16
      %v868 = vrot.slane %v866, 7
      %v869 = vshll.u32 %v818, 16
      %v871 = vor.u32 %v868, %v869
      %v872 = vsel %vm446, %v864, %v871
      %v873 = vrot.slane %v868, 4
      %v875 = vshrl.u32 %v819, 16
      %v877 = vrot.slane %v875, 7
      %v878 = vshll.u32 %v819, 16
      %v880 = vor.u32 %v877, %v878
      %v881 = vsel %vm446, %v873, %v880
      %v882 = vrot.slane %v877, 4
      %v884 = vshrl.u32 %v820, 16
      %v886 = vrot.slane %v884, 7
      %v887 = vshll.u32 %v820, 16
      %v889 = vor.u32 %v886, %v887
      %v890 = vsel %vm446, %v882, %v889
      %v891 = vrot.slane %v886, 4
      %v901 = vld [vmem:[%s332 + $0x4] sm:$0xf]
      %v902 = vsel %vm317, %v827, %v901
      %903 = vst [vmem:[%s332 + $0x4] sm:$0xf] %v902
      %904 = vst.msk [vmem:[%s332 + $0x8] sm:$0xf] %vm307, %v836
      %905 = vst.msk [vmem:[%s332 + $0xc] sm:$0xf] %vm307, %v845
      %906 = vst.msk [vmem:[%s332 + $0x10] sm:$0xf] %vm307, %v854
      %907 = vst.msk [vmem:[%s332 + $0x14] sm:$0xf] %vm307, %v863
      %908 = vst.msk [vmem:[%s332 + $0x18] sm:$0xf] %vm307, %v872
      %909 = vst.msk [vmem:[%s332 + $0x1c] sm:$0xf] %vm307, %v881
      %910 = vst.msk [vmem:[%s332 + $0x20] sm:$0xf] %vm307, %v890
      %v911 = vld [vmem:[%s332 + $0x24] sm:$0x1]
      %v912 = vsel %vm311, %v891, %v911
      %913 = vst [vmem:[%s332 + $0x24] sm:$0x1] %v912
      %s914 = scalar_lea.vmem %s300, 96
      %v915 = vld [vmem:[%s914] sm:$0xf]
      %v916 = vld [vmem:[%s914 + $0x4] sm:$0xf]
      %v917 = vld [vmem:[%s914 + $0x8] sm:$0xf]
      %v918 = vld [vmem:[%s914 + $0xc] sm:$0xf]
      %v919 = vld [vmem:[%s914 + $0x10] sm:$0xf]
      %v920 = vld [vmem:[%s914 + $0x14] sm:$0xf]
      %v921 = vld [vmem:[%s914 + $0x18] sm:$0xf]
      %v922 = vld [vmem:[%s914 + $0x1c] sm:$0xf]
      %v923 = vld [vmem:[%s2] sm:$0xf]
      %v924 = vld [vmem:[%s3] sm:$0x1]
      %v926 = vperm.slane %v924, 0
      %v936 = vunpack.c.l.b16 %v915
      %v937 = vunpack.c.l.b16 %v916
      %v938 = vunpack.c.l.b16 %v917
      %v939 = vunpack.c.l.b16 %v918
      %v940 = vunpack.c.l.b16 %v919
      %v941 = vunpack.c.l.b16 %v920
      %v942 = vunpack.c.l.b16 %v921
      %v943 = vunpack.c.l.b16 %v922
      %v944 = vpack.c.b16 %v937, %v936
      %v945 = vpack.c.b16 %v939, %v938
      %v946 = vpack.c.b16 %v941, %v940
      %v947 = vpack.c.b16 %v943, %v942
      %v949 = vsel %vm383, %v944, 0
      %v952 = vsel %vm383, %v945, 0
      %v955 = vsel %vm383, %v946, 0
      %v958 = vsel %vm383, %v947, 0
      %v961 = vsel %vm396, %v923, 0
      %963 = vmatpush.bf16.msra.mxu0 0
      %964 = vmatpush.bf16.msra.mxu0 0
      %965 = vmatpush.bf16.msra.mxu0 0
      %966 = vmatpush.bf16.msra.mxu0 0
      %967 = vmatpush.bf16.msra.mxu0 0
      %968 = vmatpush.bf16.msra.mxu0 0
      %969 = vmatpush.bf16.msra.mxu0 0
      %970 = vmatpush.bf16.msra.mxu0 %v961
      %971 = vmatmul.bf16.gmra.mxu0 %v949
      %v972 = vpop.f32.mrf.mxu0
      %v973 = vadd.f32 %v926, %v972
      %v974 = vpop.f32.mrf.mxu0
      %v975 = vadd.f32 %v926, %v974
      %976 = vmatmul.bf16.gmra.mxu0 %v952
      %v977 = vpop.f32.mrf.mxu0
      %v978 = vadd.f32 %v926, %v977
      %v979 = vpop.f32.mrf.mxu0
      %v980 = vadd.f32 %v926, %v979
      %981 = vmatmul.bf16.gmra.mxu0 %v955
      %v982 = vpop.f32.mrf.mxu0
      %v983 = vadd.f32 %v926, %v982
      %v984 = vpop.f32.mrf.mxu0
      %v985 = vadd.f32 %v926, %v984
      %986 = vmatmul.bf16.gmra.mxu0 %v958
      %v987 = vpop.f32.mrf.mxu0
      %v988 = vadd.f32 %v926, %v987
      %v989 = vpop.f32.mrf.mxu0
      %v990 = vadd.f32 %v926, %v989
      %991 = vdwg.mxu0
      %v992 = vmax.f32 %v973, 0.0
      %v993 = vmax.f32 %v975, 0.0
      %v994 = vmax.f32 %v978, 0.0
      %v995 = vmax.f32 %v980, 0.0
      %v996 = vmax.f32 %v983, 0.0
      %v997 = vmax.f32 %v985, 0.0
      %v998 = vmax.f32 %v988, 0.0
      %v999 = vmax.f32 %v990, 0.0
      %v1000 = vpack.c.bf16 %v992, %v992
      %v1001 = vpack.c.bf16 %v993, %v993
      %v1002 = vpack.c.bf16 %v994, %v994
      %v1003 = vpack.c.bf16 %v995, %v995
      %v1004 = vpack.c.bf16 %v996, %v996
      %v1005 = vpack.c.bf16 %v997, %v997
      %v1006 = vpack.c.bf16 %v998, %v998
      %v1007 = vpack.c.bf16 %v999, %v999
      %v1009 = vshrl.u32 %v1000, 16
      %v1011 = vrot.slane %v1009, 7
      %v1012 = vshll.u32 %v1000, 16
      %v1014 = vor.u32 %v1011, %v1012
      %v1015 = vrot.slane %v1011, 4
      %v1017 = vshrl.u32 %v1001, 16
      %v1019 = vrot.slane %v1017, 7
      %v1020 = vshll.u32 %v1001, 16
      %v1022 = vor.u32 %v1019, %v1020
      %v1023 = vsel %vm446, %v1015, %v1022
      %v1024 = vrot.slane %v1019, 4
      %v1026 = vshrl.u32 %v1002, 16
      %v1028 = vrot.slane %v1026, 7
      %v1029 = vshll.u32 %v1002, 16
      %v1031 = vor.u32 %v1028, %v1029
      %v1032 = vsel %vm446, %v1024, %v1031
      %v1033 = vrot.slane %v1028, 4
      %v1035 = vshrl.u32 %v1003, 16
      %v1037 = vrot.slane %v1035, 7
      %v1038 = vshll.u32 %v1003, 16
      %v1040 = vor.u32 %v1037, %v1038
      %v1041 = vsel %vm446, %v1033, %v1040
      %v1042 = vrot.slane %v1037, 4
      %v1044 = vshrl.u32 %v1004, 16
      %v1046 = vrot.slane %v1044, 7
      %v1047 = vshll.u32 %v1004, 16
      %v1049 = vor.u32 %v1046, %v1047
      %v1050 = vsel %vm446, %v1042, %v1049
      %v1051 = vrot.slane %v1046, 4
      %v1053 = vshrl.u32 %v1005, 16
      %v1055 = vrot.slane %v1053, 7
      %v1056 = vshll.u32 %v1005, 16
      %v1058 = vor.u32 %v1055, %v1056
      %v1059 = vsel %vm446, %v1051, %v1058
      %v1060 = vrot.slane %v1055, 4
      %v1062 = vshrl.u32 %v1006, 16
      %v1064 = vrot.slane %v1062, 7
      %v1065 = vshll.u32 %v1006, 16
      %v1067 = vor.u32 %v1064, %v1065
      %v1068 = vsel %vm446, %v1060, %v1067
      %v1069 = vrot.slane %v1064, 4
      %v1071 = vshrl.u32 %v1007, 16
      %v1073 = vrot.slane %v1071, 7
      %v1074 = vshll.u32 %v1007, 16
      %v1076 = vor.u32 %v1073, %v1074
      %v1077 = vsel %vm446, %v1069, %v1076
      %v1078 = vrot.slane %v1073, 4
      %v1088 = vld [vmem:[%s341 + $0x4] sm:$0xf]
      %v1089 = vsel %vm317, %v1014, %v1088
      %1090 = vst [vmem:[%s341 + $0x4] sm:$0xf] %v1089
      %1091 = vst.msk [vmem:[%s341 + $0x8] sm:$0xf] %vm307, %v1023
      %1092 = vst.msk [vmem:[%s341 + $0xc] sm:$0xf] %vm307, %v1032
      %1093 = vst.msk [vmem:[%s341 + $0x10] sm:$0xf] %vm307, %v1041
      %1094 = vst.msk [vmem:[%s341 + $0x14] sm:$0xf] %vm307, %v1050
      %1095 = vst.msk [vmem:[%s341 + $0x18] sm:$0xf] %vm307, %v1059
      %1096 = vst.msk [vmem:[%s341 + $0x1c] sm:$0xf] %vm307, %v1068
      %1097 = vst.msk [vmem:[%s341 + $0x20] sm:$0xf] %vm307, %v1077
      %v1098 = vld [vmem:[%s341 + $0x24] sm:$0x1]
      %v1099 = vsel %vm311, %v1078, %v1098
      %1100 = vst [vmem:[%s341 + $0x24] sm:$0x1] %v1099
      %v1101 = vld [vmem:[%s341] sm:$0xf]
      %v1102 = vld [vmem:[%s341 + $0x4] sm:$0xf]
      %v1103 = vld [vmem:[%s341 + $0x8] sm:$0xf]
      %v1104 = vld [vmem:[%s341 + $0xc] sm:$0xf]
      %v1105 = vld [vmem:[%s341 + $0x10] sm:$0xf]
      %v1106 = vld [vmem:[%s341 + $0x14] sm:$0xf]
      %v1107 = vld [vmem:[%s341 + $0x18] sm:$0xf]
      %v1108 = vld [vmem:[%s341 + $0x1c] sm:$0xf]
      %v1109 = vld [vmem:[%s1] sm:$0xf]
      %v1110 = vld [vmem:[%s1 + $0x4] sm:$0xf]
      %v1111 = vld [vmem:[%s1 + $0x8] sm:$0xf]
      %v1112 = vld [vmem:[%s1 + $0xc] sm:$0xf]
      %v1113 = vld [vmem:[%s1 + $0x10] sm:$0xf]
      %v1114 = vld [vmem:[%s1 + $0x14] sm:$0xf]
      %v1115 = vld [vmem:[%s1 + $0x18] sm:$0xf]
      %v1116 = vld [vmem:[%s1 + $0x1c] sm:$0xf]
      %1118 = vset.pattern.permute.xlu0 0
      %1119 = vperm.xlu0 %1118, %v1109
      %v1120 = vpop.permute.xlu0 %1119
      %v1123 = vunpack.c.l.s4 839922192
      %v1124 = vunpack.c.0.s8 %v1123
      %v1125 = vperm.slane %v1120, %v1124
      %1127 = vset.pattern.permute.xlu0 0
      %1128 = vperm.xlu0 %1127, %v1110
      %v1129 = vpop.permute.xlu0 %1128
      %v1132 = vunpack.c.l.s4 839922192
      %v1133 = vunpack.c.0.s8 %v1132
      %v1134 = vperm.slane %v1129, %v1133
      %1136 = vset.pattern.permute.xlu0 0
      %1137 = vperm.xlu0 %1136, %v1111
      %v1138 = vpop.permute.xlu0 %1137
      %v1141 = vunpack.c.l.s4 839922192
      %v1142 = vunpack.c.0.s8 %v1141
      %v1143 = vperm.slane %v1138, %v1142
      %1145 = vset.pattern.permute.xlu0 0
      %1146 = vperm.xlu0 %1145, %v1112
      %v1147 = vpop.permute.xlu0 %1146
      %v1150 = vunpack.c.l.s4 839922192
      %v1151 = vunpack.c.0.s8 %v1150
      %v1152 = vperm.slane %v1147, %v1151
      %1154 = vset.pattern.permute.xlu0 0
      %1155 = vperm.xlu0 %1154, %v1113
      %v1156 = vpop.permute.xlu0 %1155
      %v1159 = vunpack.c.l.s4 839922192
      %v1160 = vunpack.c.0.s8 %v1159
      %v1161 = vperm.slane %v1156, %v1160
      %1163 = vset.pattern.permute.xlu0 0
      %1164 = vperm.xlu0 %1163, %v1114
      %v1165 = vpop.permute.xlu0 %1164
      %v1168 = vunpack.c.l.s4 839922192
      %v1169 = vunpack.c.0.s8 %v1168
      %v1170 = vperm.slane %v1165, %v1169
      %1172 = vset.pattern.permute.xlu0 0
      %1173 = vperm.xlu0 %1172, %v1115
      %v1174 = vpop.permute.xlu0 %1173
      %v1177 = vunpack.c.l.s4 839922192
      %v1178 = vunpack.c.0.s8 %v1177
      %v1179 = vperm.slane %v1174, %v1178
      %1181 = vset.pattern.permute.xlu0 0
      %1182 = vperm.xlu0 %1181, %v1116
      %v1183 = vpop.permute.xlu0 %1182
      %v1186 = vunpack.c.l.s4 839922192
      %v1187 = vunpack.c.0.s8 %v1186
      %v1188 = vperm.slane %v1183, %v1187
      %v1189 = vunpack.c.l.bf16 %v1101
      %v1190 = vunpack.c.l.bf16 %v1102
      %v1191 = vunpack.c.l.bf16 %v1103
      %v1192 = vunpack.c.l.bf16 %v1104
      %v1193 = vunpack.c.l.bf16 %v1105
      %v1194 = vunpack.c.l.bf16 %v1106
      %v1195 = vunpack.c.l.bf16 %v1107
      %v1196 = vunpack.c.l.bf16 %v1108
      %v1197 = vunpack.c.l.bf16 %v1125
      %v1198 = vunpack.c.l.bf16 %v1134
      %v1199 = vunpack.c.l.bf16 %v1143
      %v1200 = vunpack.c.l.bf16 %v1152
      %v1201 = vunpack.c.l.bf16 %v1161
      %v1202 = vunpack.c.l.bf16 %v1170
      %v1203 = vunpack.c.l.bf16 %v1179
      %v1204 = vunpack.c.l.bf16 %v1188
      %v1205 = vmul.f32 %v1189, %v1197
      %v1206 = vmul.f32 %v1190, %v1198
      %v1207 = vmul.f32 %v1191, %v1199
      %v1208 = vmul.f32 %v1192, %v1200
      %v1209 = vmul.f32 %v1193, %v1201
      %v1210 = vmul.f32 %v1194, %v1202
      %v1211 = vmul.f32 %v1195, %v1203
      %v1212 = vmul.f32 %v1196, %v1204
      %v1213 = vpack.c.bf16 %v1205, %v1205
      %v1214 = vpack.c.bf16 %v1206, %v1206
      %v1215 = vpack.c.bf16 %v1207, %v1207
      %v1216 = vpack.c.bf16 %v1208, %v1208
      %v1217 = vpack.c.bf16 %v1209, %v1209
      %v1218 = vpack.c.bf16 %v1210, %v1210
      %v1219 = vpack.c.bf16 %v1211, %v1211
      %v1220 = vpack.c.bf16 %v1212, %v1212
      %v1221 = vld [vmem:[%s332] sm:$0xf]
      %v1222 = vld [vmem:[%s332 + $0x4] sm:$0xf]
      %v1223 = vld [vmem:[%s332 + $0x8] sm:$0xf]
      %v1224 = vld [vmem:[%s332 + $0xc] sm:$0xf]
      %v1225 = vld [vmem:[%s332 + $0x10] sm:$0xf]
      %v1226 = vld [vmem:[%s332 + $0x14] sm:$0xf]
      %v1227 = vld [vmem:[%s332 + $0x18] sm:$0xf]
      %v1228 = vld [vmem:[%s332 + $0x1c] sm:$0xf]
      %v1229 = vld [vmem:[%s332 + $0x20] sm:$0x1]
      %v1230 = vld [vmem:[%s341] sm:$0xf]
      %v1231 = vld [vmem:[%s341 + $0x4] sm:$0xf]
      %v1232 = vld [vmem:[%s341 + $0x8] sm:$0xf]
      %v1233 = vld [vmem:[%s341 + $0xc] sm:$0xf]
      %v1234 = vld [vmem:[%s341 + $0x10] sm:$0xf]
      %v1235 = vld [vmem:[%s341 + $0x14] sm:$0xf]
      %v1236 = vld [vmem:[%s341 + $0x18] sm:$0xf]
      %v1237 = vld [vmem:[%s341 + $0x1c] sm:$0xf]
      %v1238 = vld [vmem:[%s341 + $0x20] sm:$0x1]
      %v1247 = vunpack.c.l.b16 %v1213
      %v1248 = vunpack.c.l.b16 %v1214
      %v1249 = vunpack.c.l.b16 %v1215
      %v1250 = vunpack.c.l.b16 %v1216
      %v1251 = vunpack.c.l.b16 %v1217
      %v1252 = vunpack.c.l.b16 %v1218
      %v1253 = vunpack.c.l.b16 %v1219
      %v1254 = vunpack.c.l.b16 %v1220
      %v1255 = vpack.c.b16 %v1248, %v1247
      %v1256 = vpack.c.b16 %v1250, %v1249
      %v1257 = vpack.c.b16 %v1252, %v1251
      %v1258 = vpack.c.b16 %v1254, %v1253
      %v1268 = vunpack.c.l.b16 %v1221
      %v1269 = vunpack.c.l.b16 %v1222
      %v1270 = vunpack.c.l.b16 %v1223
      %v1271 = vunpack.c.l.b16 %v1224
      %v1272 = vunpack.c.l.b16 %v1225
      %v1273 = vunpack.c.l.b16 %v1226
      %v1274 = vunpack.c.l.b16 %v1227
      %v1275 = vunpack.c.l.b16 %v1228
      %v1276 = vunpack.c.l.b16 %v1229
      %v1277 = vpack.c.b16 %v1269, %v1268
      %v1278 = vpack.c.b16 %v1271, %v1270
      %v1279 = vpack.c.b16 %v1273, %v1272
      %v1280 = vpack.c.b16 %v1275, %v1274
      %v1281 = vpack.c.b16 %v1276, %v1276
      %vm1282 = vsmask.f32 7424
      %v1284 = vshrl.u32 %v1277, 16
      %v1286 = vshll.u32 %v1277, 16
      %v1288 = vrot.slane %v1286, 1
      %v1289 = vor.u32 %v1284, %v1288
      %v1291 = vshll.u32 %v1278, 16
      %v1293 = vrot.slane %v1291, 1
      %v1294 = vsel %vm1282, %v1289, %v1293
      %v1295 = vshrl.u32 %v1278, 16
      %v1297 = vor.u32 %v1295, %v1293
      %v1299 = vshll.u32 %v1279, 16
      %v1301 = vrot.slane %v1299, 1
      %v1302 = vsel %vm1282, %v1297, %v1301
      %v1303 = vshrl.u32 %v1279, 16
      %v1305 = vor.u32 %v1303, %v1301
      %v1307 = vshll.u32 %v1280, 16
      %v1309 = vrot.slane %v1307, 1
      %v1310 = vsel %vm1282, %v1305, %v1309
      %v1311 = vshrl.u32 %v1280, 16
      %v1313 = vor.u32 %v1311, %v1309
      %v1315 = vshll.u32 %v1281, 16
      %v1317 = vrot.slane %v1315, 1
      %v1318 = vsel %vm1282, %v1313, %v1317
      %1319 = vrot.lane.b32.xlu0 %v1294, 8
      %v1320 = vpop.permute.xlu0 %1319
      %1321 = vrot.lane.b32.xlu0 %v1302, 8
      %v1322 = vpop.permute.xlu0 %1321
      %1323 = vrot.lane.b32.xlu0 %v1310, 8
      %v1324 = vpop.permute.xlu0 %1323
      %1325 = vrot.lane.b32.xlu0 %v1318, 8
      %v1326 = vpop.permute.xlu0 %1325
      %v1336 = vunpack.c.l.b16 %v1230
      %v1337 = vunpack.c.l.b16 %v1231
      %v1338 = vunpack.c.l.b16 %v1232
      %v1339 = vunpack.c.l.b16 %v1233
      %v1340 = vunpack.c.l.b16 %v1234
      %v1341 = vunpack.c.l.b16 %v1235
      %v1342 = vunpack.c.l.b16 %v1236
      %v1343 = vunpack.c.l.b16 %v1237
      %v1344 = vunpack.c.l.b16 %v1238
      %v1345 = vpack.c.b16 %v1337, %v1336
      %v1346 = vpack.c.b16 %v1339, %v1338
      %v1347 = vpack.c.b16 %v1341, %v1340
      %v1348 = vpack.c.b16 %v1343, %v1342
      %v1349 = vpack.c.b16 %v1344, %v1344
      %v1351 = vshrl.u32 %v1345, 16
      %v1353 = vshll.u32 %v1345, 16
      %v1355 = vrot.slane %v1353, 1
      %v1356 = vor.u32 %v1351, %v1355
      %v1358 = vshll.u32 %v1346, 16
      %v1360 = vrot.slane %v1358, 1
      %v1361 = vsel %vm1282, %v1356, %v1360
      %v1362 = vshrl.u32 %v1346, 16
      %v1364 = vor.u32 %v1362, %v1360
      %v1366 = vshll.u32 %v1347, 16
      %v1368 = vrot.slane %v1366, 1
      %v1369 = vsel %vm1282, %v1364, %v1368
      %v1370 = vshrl.u32 %v1347, 16
      %v1372 = vor.u32 %v1370, %v1368
      %v1374 = vshll.u32 %v1348, 16
      %v1376 = vrot.slane %v1374, 1
      %v1377 = vsel %vm1282, %v1372, %v1376
      %v1378 = vshrl.u32 %v1348, 16
      %v1380 = vor.u32 %v1378, %v1376
      %v1382 = vshll.u32 %v1349, 16
      %v1384 = vrot.slane %v1382, 1
      %v1385 = vsel %vm1282, %v1380, %v1384
      %1386 = vrot.lane.b32.xlu0 %v1361, 16
      %v1387 = vpop.permute.xlu0 %1386
      %1388 = vrot.lane.b32.xlu0 %v1369, 16
      %v1389 = vpop.permute.xlu0 %1388
      %1390 = vrot.lane.b32.xlu0 %v1377, 16
      %v1391 = vpop.permute.xlu0 %1390
      %1392 = vrot.lane.b32.xlu0 %v1385, 16
      %v1393 = vpop.permute.xlu0 %1392
      %v1396 = vsel %vm383, %v1255, %v1320
      %v1399 = vsel %vm383, %v1256, %v1322
      %v1402 = vsel %vm383, %v1257, %v1324
      %v1405 = vsel %vm383, %v1258, %v1326
      %vm1406 = vcmask 130048
      %v1408 = vsel %vm1406, %v1396, %v1387
      %v1410 = vsel %vm1406, %v1399, %v1389
      %v1412 = vsel %vm1406, %v1402, %v1391
      %v1414 = vsel %vm1406, %v1405, %v1393
      %v1415 = vld [vmem:[%s4] sm:$0xf]
      %v1416 = vld [vmem:[%s4 + $0x4] sm:$0xf]
      %v1417 = vld [vmem:[%s4 + $0x8] sm:$0xf]
      %v1418 = vld [vmem:[%s323 + $0x4] sm:$0xf]
      %v1419 = vld [vmem:[%s323 + $0x8] sm:$0xf]
      %v1420 = vld [vmem:[%s323 + $0xc] sm:$0xf]
      %v1421 = vld [vmem:[%s323 + $0x10] sm:$0xf]
      %v1422 = vld [vmem:[%s323 + $0x14] sm:$0xf]
      %v1423 = vld [vmem:[%s323 + $0x18] sm:$0xf]
      %v1424 = vld [vmem:[%s323 + $0x1c] sm:$0xf]
      %v1425 = vld [vmem:[%s323 + $0x20] sm:$0xf]
      %v1426 = vunpack.c.l.bf16 %v1418
      %v1427 = vunpack.c.l.bf16 %v1419
      %v1428 = vunpack.c.l.bf16 %v1420
      %v1429 = vunpack.c.l.bf16 %v1421
      %v1430 = vunpack.c.l.bf16 %v1422
      %v1431 = vunpack.c.l.bf16 %v1423
      %v1432 = vunpack.c.l.bf16 %v1424
      %v1433 = vunpack.c.l.bf16 %v1425
      %v1434 = vmul.f32 %v1426, %v1197
      %v1435 = vmul.f32 %v1427, %v1198
      %v1436 = vmul.f32 %v1428, %v1199
      %v1437 = vmul.f32 %v1429, %v1200
      %v1438 = vmul.f32 %v1430, %v1201
      %v1439 = vmul.f32 %v1431, %v1202
      %v1440 = vmul.f32 %v1432, %v1203
      %v1441 = vmul.f32 %v1433, %v1204
      %v1442 = vpack.c.bf16 %v1434, %v1434
      %v1443 = vpack.c.bf16 %v1435, %v1435
      %v1444 = vpack.c.bf16 %v1436, %v1436
      %v1445 = vpack.c.bf16 %v1437, %v1437
      %v1446 = vpack.c.bf16 %v1438, %v1438
      %v1447 = vpack.c.bf16 %v1439, %v1439
      %v1448 = vpack.c.bf16 %v1440, %v1440
      %v1449 = vpack.c.bf16 %v1441, %v1441
      %v1450 = vld [vmem:[#allocation2 + $0x4] sm:$0xf]
      %v1451 = vld [vmem:[#allocation2 + $0x8] sm:$0xf]
      %v1452 = vld [vmem:[#allocation2 + $0xc] sm:$0xf]
      %v1453 = vld [vmem:[#allocation2 + $0x10] sm:$0xf]
      %v1454 = vld [vmem:[#allocation2 + $0x14] sm:$0xf]
      %v1455 = vld [vmem:[#allocation2 + $0x18] sm:$0xf]
      %v1456 = vld [vmem:[#allocation2 + $0x1c] sm:$0xf]
      %v1457 = vld [vmem:[#allocation2 + $0x20] sm:$0xf]
      %v1458 = vld [vmem:[#allocation2 + $0x24] sm:$0x1]
      %v1459 = vld [vmem:[%s323 + $0x24] sm:$0x1]
      %v1468 = vunpack.c.l.b16 %v1442
      %v1469 = vunpack.c.l.b16 %v1443
      %v1470 = vunpack.c.l.b16 %v1444
      %v1471 = vunpack.c.l.b16 %v1445
      %v1472 = vunpack.c.l.b16 %v1446
      %v1473 = vunpack.c.l.b16 %v1447
      %v1474 = vunpack.c.l.b16 %v1448
      %v1475 = vunpack.c.l.b16 %v1449
      %v1476 = vpack.c.b16 %v1469, %v1468
      %v1477 = vpack.c.b16 %v1471, %v1470
      %v1478 = vpack.c.b16 %v1473, %v1472
      %v1479 = vpack.c.b16 %v1475, %v1474
      %v1489 = vunpack.c.l.b16 %v1450
      %v1490 = vunpack.c.l.b16 %v1451
      %v1491 = vunpack.c.l.b16 %v1452
      %v1492 = vunpack.c.l.b16 %v1453
      %v1493 = vunpack.c.l.b16 %v1454
      %v1494 = vunpack.c.l.b16 %v1455
      %v1495 = vunpack.c.l.b16 %v1456
      %v1496 = vunpack.c.l.b16 %v1457
      %v1497 = vunpack.c.l.b16 %v1458
      %v1498 = vpack.c.b16 %v1490, %v1489
      %v1499 = vpack.c.b16 %v1492, %v1491
      %v1500 = vpack.c.b16 %v1494, %v1493
      %v1501 = vpack.c.b16 %v1496, %v1495
      %v1502 = vpack.c.b16 %v1497, %v1497
      %v1504 = vshrl.u32 %v1498, 16
      %v1506 = vshll.u32 %v1498, 16
      %v1508 = vrot.slane %v1506, 1
      %v1509 = vor.u32 %v1504, %v1508
      %v1511 = vshll.u32 %v1499, 16
      %v1513 = vrot.slane %v1511, 1
      %v1514 = vsel %vm1282, %v1509, %v1513
      %v1515 = vshrl.u32 %v1499, 16
      %v1517 = vor.u32 %v1515, %v1513
      %v1519 = vshll.u32 %v1500, 16
      %v1521 = vrot.slane %v1519, 1
      %v1522 = vsel %vm1282, %v1517, %v1521
      %v1523 = vshrl.u32 %v1500, 16
      %v1525 = vor.u32 %v1523, %v1521
      %v1527 = vshll.u32 %v1501, 16
      %v1529 = vrot.slane %v1527, 1
      %v1530 = vsel %vm1282, %v1525, %v1529
      %v1531 = vshrl.u32 %v1501, 16
      %v1533 = vor.u32 %v1531, %v1529
      %v1535 = vshll.u32 %v1502, 16
      %v1537 = vrot.slane %v1535, 1
      %v1538 = vsel %vm1282, %v1533, %v1537
      %1539 = vrot.lane.b32.xlu0 %v1514, 8
      %v1540 = vpop.permute.xlu0 %1539
      %1541 = vrot.lane.b32.xlu0 %v1522, 8
      %v1542 = vpop.permute.xlu0 %1541
      %1543 = vrot.lane.b32.xlu0 %v1530, 8
      %v1544 = vpop.permute.xlu0 %1543
      %1545 = vrot.lane.b32.xlu0 %v1538, 8
      %v1546 = vpop.permute.xlu0 %1545
      %v1556 = vunpack.c.l.b16 %v1418
      %v1557 = vunpack.c.l.b16 %v1419
      %v1558 = vunpack.c.l.b16 %v1420
      %v1559 = vunpack.c.l.b16 %v1421
      %v1560 = vunpack.c.l.b16 %v1422
      %v1561 = vunpack.c.l.b16 %v1423
      %v1562 = vunpack.c.l.b16 %v1424
      %v1563 = vunpack.c.l.b16 %v1425
      %v1564 = vunpack.c.l.b16 %v1459
      %v1565 = vpack.c.b16 %v1557, %v1556
      %v1566 = vpack.c.b16 %v1559, %v1558
      %v1567 = vpack.c.b16 %v1561, %v1560
      %v1568 = vpack.c.b16 %v1563, %v1562
      %v1569 = vpack.c.b16 %v1564, %v1564
      %v1571 = vshrl.u32 %v1565, 16
      %v1573 = vshll.u32 %v1565, 16
      %v1575 = vrot.slane %v1573, 1
      %v1576 = vor.u32 %v1571, %v1575
      %v1578 = vshll.u32 %v1566, 16
      %v1580 = vrot.slane %v1578, 1
      %v1581 = vsel %vm1282, %v1576, %v1580
      %v1582 = vshrl.u32 %v1566, 16
      %v1584 = vor.u32 %v1582, %v1580
      %v1586 = vshll.u32 %v1567, 16
      %v1588 = vrot.slane %v1586, 1
      %v1589 = vsel %vm1282, %v1584, %v1588
      %v1590 = vshrl.u32 %v1567, 16
      %v1592 = vor.u32 %v1590, %v1588
      %v1594 = vshll.u32 %v1568, 16
      %v1596 = vrot.slane %v1594, 1
      %v1597 = vsel %vm1282, %v1592, %v1596
      %v1598 = vshrl.u32 %v1568, 16
      %v1600 = vor.u32 %v1598, %v1596
      %v1602 = vshll.u32 %v1569, 16
      %v1604 = vrot.slane %v1602, 1
      %v1605 = vsel %vm1282, %v1600, %v1604
      %1606 = vrot.lane.b32.xlu0 %v1581, 16
      %v1607 = vpop.permute.xlu0 %1606
      %1608 = vrot.lane.b32.xlu0 %v1589, 16
      %v1609 = vpop.permute.xlu0 %1608
      %1610 = vrot.lane.b32.xlu0 %v1597, 16
      %v1611 = vpop.permute.xlu0 %1610
      %1612 = vrot.lane.b32.xlu0 %v1605, 16
      %v1613 = vpop.permute.xlu0 %1612
      %v1616 = vsel %vm383, %v1476, %v1540
      %v1619 = vsel %vm383, %v1477, %v1542
      %v1622 = vsel %vm383, %v1478, %v1544
      %v1625 = vsel %vm383, %v1479, %v1546
      %v1627 = vsel %vm1406, %v1616, %v1607
      %v1629 = vsel %vm1406, %v1619, %v1609
      %v1631 = vsel %vm1406, %v1622, %v1611
      %v1633 = vsel %vm1406, %v1625, %v1613
      %s1634 = scalar_lea.vmem %s4, 12
      %v1635 = vld [vmem:[%s1634] sm:$0xf]
      %v1636 = vld [vmem:[%s1634 + $0x4] sm:$0xf]
      %v1637 = vld [vmem:[%s1634 + $0x8] sm:$0xf]
      %v1641 = vunpack.c.l.b16 %v1635
      %v1642 = vunpack.c.l.b16 %v1636
      %v1643 = vunpack.c.l.b16 %v1637
      %v1644 = vpack.c.b16 %v1642, %v1641
      %v1645 = vpack.c.b16 %v1643, %v1643
      %vm1647 = vcmask 195584
      %v1648 = vsel %vm1647, %v1627, 0
      %v1650 = vsel %vm1647, %v1629, 0
      %v1652 = vsel %vm1647, %v1631, 0
      %v1654 = vsel %vm1647, %v1633, 0
      %v1657 = vsel %vm396, %v1645, 0
      %1659 = vmatpush.bf16.msra.mxu0 0
      %1660 = vmatpush.bf16.msra.mxu0 0
      %1661 = vmatpush.bf16.msra.mxu0 0
      %1662 = vmatpush.bf16.msra.mxu0 0
      %1663 = vmatpush.bf16.msra.mxu0 0
      %1664 = vmatpush.bf16.msra.mxu0 0
      %1665 = vmatpush.bf16.msra.mxu0 %v1657
      %1666 = vmatpush.bf16.msra.mxu0 %v1644
      %1667 = vmatmul.bf16.gmra.mxu0 %v1648
      %v1668 = vpop.f32.mrf.mxu0
      %v1669 = vadd.f32 0.0, %v1668
      %v1670 = vpop.f32.mrf.mxu0
      %v1671 = vadd.f32 0.0, %v1670
      %1672 = vmatmul.bf16.gmra.mxu0 %v1650
      %v1673 = vpop.f32.mrf.mxu0
      %v1674 = vadd.f32 0.0, %v1673
      %v1675 = vpop.f32.mrf.mxu0
      %v1676 = vadd.f32 0.0, %v1675
      %1677 = vmatmul.bf16.gmra.mxu0 %v1652
      %v1678 = vpop.f32.mrf.mxu0
      %v1679 = vadd.f32 0.0, %v1678
      %v1680 = vpop.f32.mrf.mxu0
      %v1681 = vadd.f32 0.0, %v1680
      %1682 = vmatmul.bf16.gmra.mxu0 %v1654
      %v1683 = vpop.f32.mrf.mxu0
      %v1684 = vadd.f32 0.0, %v1683
      %v1685 = vpop.f32.mrf.mxu0
      %v1686 = vadd.f32 0.0, %v1685
      %1687 = vdwg.mxu0
      %v1691 = vunpack.c.l.b16 %v1415
      %v1692 = vunpack.c.l.b16 %v1416
      %v1693 = vunpack.c.l.b16 %v1417
      %v1694 = vpack.c.b16 %v1692, %v1691
      %v1695 = vpack.c.b16 %v1693, %v1693
      %v1697 = vsel %vm1647, %v1408, 0
      %v1699 = vsel %vm1647, %v1410, 0
      %v1701 = vsel %vm1647, %v1412, 0
      %v1703 = vsel %vm1647, %v1414, 0
      %v1706 = vsel %vm396, %v1695, 0
      %1708 = vmatpush.bf16.msra.mxu0 0
      %1709 = vmatpush.bf16.msra.mxu0 0
      %1710 = vmatpush.bf16.msra.mxu0 0
      %1711 = vmatpush.bf16.msra.mxu0 0
      %1712 = vmatpush.bf16.msra.mxu0 0
      %1713 = vmatpush.bf16.msra.mxu0 0
      %1714 = vmatpush.bf16.msra.mxu0 %v1706
      %1715 = vmatpush.bf16.msra.mxu0 %v1694
      %1716 = vmatmul.bf16.gmra.mxu0 %v1697
      %v1717 = vpop.f32.mrf.mxu0
      %v1718 = vadd.f32 %v1669, %v1717
      %v1719 = vpop.f32.mrf.mxu0
      %v1720 = vadd.f32 %v1671, %v1719
      %1721 = vmatmul.bf16.gmra.mxu0 %v1699
      %v1722 = vpop.f32.mrf.mxu0
      %v1723 = vadd.f32 %v1674, %v1722
      %v1724 = vpop.f32.mrf.mxu0
      %v1725 = vadd.f32 %v1676, %v1724
      %1726 = vmatmul.bf16.gmra.mxu0 %v1701
      %v1727 = vpop.f32.mrf.mxu0
      %v1728 = vadd.f32 %v1679, %v1727
      %v1729 = vpop.f32.mrf.mxu0
      %v1730 = vadd.f32 %v1681, %v1729
      %1731 = vmatmul.bf16.gmra.mxu0 %v1703
      %v1732 = vpop.f32.mrf.mxu0
      %v1733 = vadd.f32 %v1684, %v1732
      %v1734 = vpop.f32.mrf.mxu0
      %v1735 = vadd.f32 %v1686, %v1734
      %1736 = vdwg.mxu0
      %v1737 = vld [vmem:[%s341 + $0x20] sm:$0xf]
      %v1738 = vunpack.c.l.bf16 %v1231
      %v1739 = vunpack.c.l.bf16 %v1232
      %v1740 = vunpack.c.l.bf16 %v1233
      %v1741 = vunpack.c.l.bf16 %v1234
      %v1742 = vunpack.c.l.bf16 %v1235
      %v1743 = vunpack.c.l.bf16 %v1236
      %v1744 = vunpack.c.l.bf16 %v1237
      %v1745 = vunpack.c.l.bf16 %v1737
      %v1746 = vmul.f32 %v1738, %v1197
      %v1747 = vmul.f32 %v1739, %v1198
      %v1748 = vmul.f32 %v1740, %v1199
      %v1749 = vmul.f32 %v1741, %v1200
      %v1750 = vmul.f32 %v1742, %v1201
      %v1751 = vmul.f32 %v1743, %v1202
      %v1752 = vmul.f32 %v1744, %v1203
      %v1753 = vmul.f32 %v1745, %v1204
      %v1754 = vpack.c.bf16 %v1746, %v1746
      %v1755 = vpack.c.bf16 %v1747, %v1747
      %v1756 = vpack.c.bf16 %v1748, %v1748
      %v1757 = vpack.c.bf16 %v1749, %v1749
      %v1758 = vpack.c.bf16 %v1750, %v1750
      %v1759 = vpack.c.bf16 %v1751, %v1751
      %v1760 = vpack.c.bf16 %v1752, %v1752
      %v1761 = vpack.c.bf16 %v1753, %v1753
      %v1762 = vld [vmem:[%s332 + $0x4] sm:$0xf]
      %v1763 = vld [vmem:[%s332 + $0x8] sm:$0xf]
      %v1764 = vld [vmem:[%s332 + $0xc] sm:$0xf]
      %v1765 = vld [vmem:[%s332 + $0x10] sm:$0xf]
      %v1766 = vld [vmem:[%s332 + $0x14] sm:$0xf]
      %v1767 = vld [vmem:[%s332 + $0x18] sm:$0xf]
      %v1768 = vld [vmem:[%s332 + $0x1c] sm:$0xf]
      %v1769 = vld [vmem:[%s332 + $0x20] sm:$0xf]
      %v1770 = vld [vmem:[%s332 + $0x24] sm:$0x1]
      %v1771 = vld [vmem:[%s341 + $0x4] sm:$0xf]
      %v1772 = vld [vmem:[%s341 + $0x8] sm:$0xf]
      %v1773 = vld [vmem:[%s341 + $0xc] sm:$0xf]
      %v1774 = vld [vmem:[%s341 + $0x10] sm:$0xf]
      %v1775 = vld [vmem:[%s341 + $0x14] sm:$0xf]
      %v1776 = vld [vmem:[%s341 + $0x18] sm:$0xf]
      %v1777 = vld [vmem:[%s341 + $0x1c] sm:$0xf]
      %v1778 = vld [vmem:[%s341 + $0x24] sm:$0x1]
      %v1787 = vunpack.c.l.b16 %v1754
      %v1788 = vunpack.c.l.b16 %v1755
      %v1789 = vunpack.c.l.b16 %v1756
      %v1790 = vunpack.c.l.b16 %v1757
      %v1791 = vunpack.c.l.b16 %v1758
      %v1792 = vunpack.c.l.b16 %v1759
      %v1793 = vunpack.c.l.b16 %v1760
      %v1794 = vunpack.c.l.b16 %v1761
      %v1795 = vpack.c.b16 %v1788, %v1787
      %v1796 = vpack.c.b16 %v1790, %v1789
      %v1797 = vpack.c.b16 %v1792, %v1791
      %v1798 = vpack.c.b16 %v1794, %v1793
      %v1808 = vunpack.c.l.b16 %v1762
      %v1809 = vunpack.c.l.b16 %v1763
      %v1810 = vunpack.c.l.b16 %v1764
      %v1811 = vunpack.c.l.b16 %v1765
      %v1812 = vunpack.c.l.b16 %v1766
      %v1813 = vunpack.c.l.b16 %v1767
      %v1814 = vunpack.c.l.b16 %v1768
      %v1815 = vunpack.c.l.b16 %v1769
      %v1816 = vunpack.c.l.b16 %v1770
      %v1817 = vpack.c.b16 %v1809, %v1808
      %v1818 = vpack.c.b16 %v1811, %v1810
      %v1819 = vpack.c.b16 %v1813, %v1812
      %v1820 = vpack.c.b16 %v1815, %v1814
      %v1821 = vpack.c.b16 %v1816, %v1816
      %v1823 = vshrl.u32 %v1817, 16
      %v1825 = vshll.u32 %v1817, 16
      %v1827 = vrot.slane %v1825, 1
      %v1828 = vor.u32 %v1823, %v1827
      %v1830 = vshll.u32 %v1818, 16
      %v1832 = vrot.slane %v1830, 1
      %v1833 = vsel %vm1282, %v1828, %v1832
      %v1834 = vshrl.u32 %v1818, 16
      %v1836 = vor.u32 %v1834, %v1832
      %v1838 = vshll.u32 %v1819, 16
      %v1840 = vrot.slane %v1838, 1
      %v1841 = vsel %vm1282, %v1836, %v1840
      %v1842 = vshrl.u32 %v1819, 16
      %v1844 = vor.u32 %v1842, %v1840
      %v1846 = vshll.u32 %v1820, 16
      %v1848 = vrot.slane %v1846, 1
      %v1849 = vsel %vm1282, %v1844, %v1848
      %v1850 = vshrl.u32 %v1820, 16
      %v1852 = vor.u32 %v1850, %v1848
      %v1854 = vshll.u32 %v1821, 16
      %v1856 = vrot.slane %v1854, 1
      %v1857 = vsel %vm1282, %v1852, %v1856
      %1858 = vrot.lane.b32.xlu0 %v1833, 8
      %v1859 = vpop.permute.xlu0 %1858
      %1860 = vrot.lane.b32.xlu0 %v1841, 8
      %v1861 = vpop.permute.xlu0 %1860
      %1862 = vrot.lane.b32.xlu0 %v1849, 8
      %v1863 = vpop.permute.xlu0 %1862
      %1864 = vrot.lane.b32.xlu0 %v1857, 8
      %v1865 = vpop.permute.xlu0 %1864
      %v1875 = vunpack.c.l.b16 %v1771
      %v1876 = vunpack.c.l.b16 %v1772
      %v1877 = vunpack.c.l.b16 %v1773
      %v1878 = vunpack.c.l.b16 %v1774
      %v1879 = vunpack.c.l.b16 %v1775
      %v1880 = vunpack.c.l.b16 %v1776
      %v1881 = vunpack.c.l.b16 %v1777
      %v1882 = vunpack.c.l.b16 %v1737
      %v1883 = vunpack.c.l.b16 %v1778
      %v1884 = vpack.c.b16 %v1876, %v1875
      %v1885 = vpack.c.b16 %v1878, %v1877
      %v1886 = vpack.c.b16 %v1880, %v1879
      %v1887 = vpack.c.b16 %v1882, %v1881
      %v1888 = vpack.c.b16 %v1883, %v1883
      %v1890 = vshrl.u32 %v1884, 16
      %v1892 = vshll.u32 %v1884, 16
      %v1894 = vrot.slane %v1892, 1
      %v1895 = vor.u32 %v1890, %v1894
      %v1897 = vshll.u32 %v1885, 16
      %v1899 = vrot.slane %v1897, 1
      %v1900 = vsel %vm1282, %v1895, %v1899
      %v1901 = vshrl.u32 %v1885, 16
      %v1903 = vor.u32 %v1901, %v1899
      %v1905 = vshll.u32 %v1886, 16
      %v1907 = vrot.slane %v1905, 1
      %v1908 = vsel %vm1282, %v1903, %v1907
      %v1909 = vshrl.u32 %v1886, 16
      %v1911 = vor.u32 %v1909, %v1907
      %v1913 = vshll.u32 %v1887, 16
      %v1915 = vrot.slane %v1913, 1
      %v1916 = vsel %vm1282, %v1911, %v1915
      %v1917 = vshrl.u32 %v1887, 16
      %v1919 = vor.u32 %v1917, %v1915
      %v1921 = vshll.u32 %v1888, 16
      %v1923 = vrot.slane %v1921, 1
      %v1924 = vsel %vm1282, %v1919, %v1923
      %1925 = vrot.lane.b32.xlu0 %v1900, 16
      %v1926 = vpop.permute.xlu0 %1925
      %1927 = vrot.lane.b32.xlu0 %v1908, 16
      %v1928 = vpop.permute.xlu0 %1927
      %1929 = vrot.lane.b32.xlu0 %v1916, 16
      %v1930 = vpop.permute.xlu0 %1929
      %1931 = vrot.lane.b32.xlu0 %v1924, 16
      %v1932 = vpop.permute.xlu0 %1931
      %v1935 = vsel %vm383, %v1795, %v1859
      %v1938 = vsel %vm383, %v1796, %v1861
      %v1941 = vsel %vm383, %v1797, %v1863
      %v1944 = vsel %vm383, %v1798, %v1865
      %v1946 = vsel %vm1406, %v1935, %v1926
      %v1948 = vsel %vm1406, %v1938, %v1928
      %v1950 = vsel %vm1406, %v1941, %v1930
      %v1952 = vsel %vm1406, %v1944, %v1932
      %s1953 = scalar_lea.vmem %s4, 24
      %v1954 = vld [vmem:[%s1953] sm:$0xf]
      %v1955 = vld [vmem:[%s1953 + $0x4] sm:$0xf]
      %v1956 = vld [vmem:[%s1953 + $0x8] sm:$0xf]
      %v1960 = vunpack.c.l.b16 %v1954
      %v1961 = vunpack.c.l.b16 %v1955
      %v1962 = vunpack.c.l.b16 %v1956
      %v1963 = vpack.c.b16 %v1961, %v1960
      %v1964 = vpack.c.b16 %v1962, %v1962
      %v1966 = vsel %vm1647, %v1946, 0
      %v1968 = vsel %vm1647, %v1948, 0
      %v1970 = vsel %vm1647, %v1950, 0
      %v1972 = vsel %vm1647, %v1952, 0
      %v1975 = vsel %vm396, %v1964, 0
      %1977 = vmatpush.bf16.msra.mxu0 0
      %1978 = vmatpush.bf16.msra.mxu0 0
      %1979 = vmatpush.bf16.msra.mxu0 0
      %1980 = vmatpush.bf16.msra.mxu0 0
      %1981 = vmatpush.bf16.msra.mxu0 0
      %1982 = vmatpush.bf16.msra.mxu0 0
      %1983 = vmatpush.bf16.msra.mxu0 %v1975
      %1984 = vmatpush.bf16.msra.mxu0 %v1963
      %1985 = vmatmul.bf16.gmra.mxu0 %v1966
      %v1986 = vpop.f32.mrf.mxu0
      %v1987 = vadd.f32 0.0, %v1986
      %v1988 = vpop.f32.mrf.mxu0
      %v1989 = vadd.f32 0.0, %v1988
      %1990 = vmatmul.bf16.gmra.mxu0 %v1968
      %v1991 = vpop.f32.mrf.mxu0
      %v1992 = vadd.f32 0.0, %v1991
      %v1993 = vpop.f32.mrf.mxu0
      %v1994 = vadd.f32 0.0, %v1993
      %1995 = vmatmul.bf16.gmra.mxu0 %v1970
      %v1996 = vpop.f32.mrf.mxu0
      %v1997 = vadd.f32 0.0, %v1996
      %v1998 = vpop.f32.mrf.mxu0
      %v1999 = vadd.f32 0.0, %v1998
      %2000 = vmatmul.bf16.gmra.mxu0 %v1972
      %v2001 = vpop.f32.mrf.mxu0
      %v2002 = vadd.f32 0.0, %v2001
      %v2003 = vpop.f32.mrf.mxu0
      %v2004 = vadd.f32 0.0, %v2003
      %2005 = vdwg.mxu0
      %v2006 = vadd.f32 %v1718, %v1987
      %v2007 = vadd.f32 %v1720, %v1989
      %v2008 = vadd.f32 %v1723, %v1992
      %v2009 = vadd.f32 %v1725, %v1994
      %v2010 = vadd.f32 %v1728, %v1997
      %v2011 = vadd.f32 %v1730, %v1999
      %v2012 = vadd.f32 %v1733, %v2002
      %v2013 = vadd.f32 %v1735, %v2004
      %v2014 = vld [vmem:[%s5] sm:$0x1]
      %v2016 = vperm.slane %v2014, 0
      %v2018 = vadd.f32 %v2006, %v2016
      %v2019 = vadd.f32 %v2007, %v2016
      %v2020 = vadd.f32 %v2008, %v2016
      %v2021 = vadd.f32 %v2009, %v2016
      %v2022 = vadd.f32 %v2010, %v2016
      %v2023 = vadd.f32 %v2011, %v2016
      %v2024 = vadd.f32 %v2012, %v2016
      %v2025 = vadd.f32 %v2013, %v2016
      %v2026 = vmax.f32 %v2018, 0.0
      %v2027 = vmax.f32 %v2019, 0.0
      %v2028 = vmax.f32 %v2020, 0.0
      %v2029 = vmax.f32 %v2021, 0.0
      %v2030 = vmax.f32 %v2022, 0.0
      %v2031 = vmax.f32 %v2023, 0.0
      %v2032 = vmax.f32 %v2024, 0.0
      %v2033 = vmax.f32 %v2025, 0.0
      %v2034 = vpack.c.bf16 %v2026, %v2026
      %v2035 = vpack.c.bf16 %v2027, %v2027
      %v2036 = vpack.c.bf16 %v2028, %v2028
      %v2037 = vpack.c.bf16 %v2029, %v2029
      %v2038 = vpack.c.bf16 %v2030, %v2030
      %v2039 = vpack.c.bf16 %v2031, %v2031
      %v2040 = vpack.c.bf16 %v2032, %v2032
      %v2041 = vpack.c.bf16 %v2033, %v2033
      %v2042 = vld [vmem:[%s300] sm:$0xf]
      %v2043 = vld [vmem:[%s300 + $0x4] sm:$0xf]
      %v2044 = vld [vmem:[%s300 + $0x8] sm:$0xf]
      %v2045 = vld [vmem:[%s300 + $0xc] sm:$0xf]
      %v2046 = vld [vmem:[%s300 + $0x10] sm:$0xf]
      %v2047 = vld [vmem:[%s300 + $0x14] sm:$0xf]
      %v2048 = vld [vmem:[%s300 + $0x18] sm:$0xf]
      %v2049 = vld [vmem:[%s300 + $0x1c] sm:$0xf]
      %v2058 = vunpack.c.l.b16 %v2034
      %v2059 = vunpack.c.l.b16 %v2035
      %v2060 = vunpack.c.l.b16 %v2036
      %v2061 = vunpack.c.l.b16 %v2037
      %v2062 = vunpack.c.l.b16 %v2038
      %v2063 = vunpack.c.l.b16 %v2039
      %v2064 = vunpack.c.l.b16 %v2040
      %v2065 = vunpack.c.l.b16 %v2041
      %v2066 = vpack.c.b16 %v2059, %v2058
      %v2067 = vpack.c.b16 %v2061, %v2060
      %v2068 = vpack.c.b16 %v2063, %v2062
      %v2069 = vpack.c.b16 %v2065, %v2064
      %v2078 = vunpack.c.l.b16 %v2042
      %v2079 = vunpack.c.l.b16 %v2043
      %v2080 = vunpack.c.l.b16 %v2044
      %v2081 = vunpack.c.l.b16 %v2045
      %v2082 = vunpack.c.l.b16 %v2046
      %v2083 = vunpack.c.l.b16 %v2047
      %v2084 = vunpack.c.l.b16 %v2048
      %v2085 = vunpack.c.l.b16 %v2049
      %v2086 = vpack.c.b16 %v2079, %v2078
      %v2087 = vpack.c.b16 %v2081, %v2080
      %v2088 = vpack.c.b16 %v2083, %v2082
      %v2089 = vpack.c.b16 %v2085, %v2084
      %2090 = vrot.lane.b32.xlu0 %v2086, 8
      %v2091 = vpop.permute.xlu0 %2090
      %2092 = vrot.lane.b32.xlu0 %v2087, 8
      %v2093 = vpop.permute.xlu0 %2092
      %2094 = vrot.lane.b32.xlu0 %v2088, 8
      %v2095 = vpop.permute.xlu0 %2094
      %2096 = vrot.lane.b32.xlu0 %v2089, 8
      %v2097 = vpop.permute.xlu0 %2096
      %v2100 = vsel %vm383, %v2066, %v2091
      %v2103 = vsel %vm383, %v2067, %v2093
      %v2106 = vsel %vm383, %v2068, %v2095
      %v2109 = vsel %vm383, %v2069, %v2097
      %v2110 = vld [vmem:[%s6] sm:$0xf]
      %v2111 = vld [vmem:[%s6 + $0x4] sm:$0xf]
      %v2112 = vld [vmem:[%s7] sm:$0x1]
      %v2114 = vperm.slane %v2112, 0
      %v2118 = vunpack.c.l.b16 %v2110
      %v2119 = vunpack.c.l.b16 %v2111
      %v2120 = vpack.c.b16 %v2119, %v2118
      %v2122 = vsel %vm1406, %v2100, 0
      %v2124 = vsel %vm1406, %v2103, 0
      %v2126 = vsel %vm1406, %v2106, 0
      %v2128 = vsel %vm1406, %v2109, 0
      %2130 = vmatpush.bf16.msra.mxu0 0
      %2131 = vmatpush.bf16.msra.mxu0 0
      %2132 = vmatpush.bf16.msra.mxu0 0
      %2133 = vmatpush.bf16.msra.mxu0 0
      %2134 = vmatpush.bf16.msra.mxu0 0
      %2135 = vmatpush.bf16.msra.mxu0 0
      %2136 = vmatpush.bf16.msra.mxu0 0
      %2137 = vmatpush.bf16.msra.mxu0 %v2120
      %2138 = vmatmul.bf16.gmra.mxu0 %v2122
      %v2139 = vpop.f32.mrf.mxu0
      %v2140 = vadd.f32 %v2114, %v2139
      %v2141 = vpop.f32.mrf.mxu0
      %v2142 = vadd.f32 %v2114, %v2141
      %2143 = vmatmul.bf16.gmra.mxu0 %v2124
      %v2144 = vpop.f32.mrf.mxu0
      %v2145 = vadd.f32 %v2114, %v2144
      %v2146 = vpop.f32.mrf.mxu0
      %v2147 = vadd.f32 %v2114, %v2146
      %2148 = vmatmul.bf16.gmra.mxu0 %v2126
      %v2149 = vpop.f32.mrf.mxu0
      %v2150 = vadd.f32 %v2114, %v2149
      %v2151 = vpop.f32.mrf.mxu0
      %v2152 = vadd.f32 %v2114, %v2151
      %2153 = vmatmul.bf16.gmra.mxu0 %v2128
      %v2154 = vpop.f32.mrf.mxu0
      %v2155 = vadd.f32 %v2114, %v2154
      %v2156 = vpop.f32.mrf.mxu0
      %v2157 = vadd.f32 %v2114, %v2156
      %2158 = vdwg.mxu0
      %v2159 = vmax.f32 %v2140, 0.0
      %v2160 = vmax.f32 %v2142, 0.0
      %v2161 = vmax.f32 %v2145, 0.0
      %v2162 = vmax.f32 %v2147, 0.0
      %v2163 = vmax.f32 %v2150, 0.0
      %v2164 = vmax.f32 %v2152, 0.0
      %v2165 = vmax.f32 %v2155, 0.0
      %v2166 = vmax.f32 %v2157, 0.0
      %v2167 = vpack.c.bf16 %v2159, %v2159
      %v2168 = vpack.c.bf16 %v2160, %v2160
      %v2169 = vpack.c.bf16 %v2161, %v2161
      %v2170 = vpack.c.bf16 %v2162, %v2162
      %v2171 = vpack.c.bf16 %v2163, %v2163
      %v2172 = vpack.c.bf16 %v2164, %v2164
      %v2173 = vpack.c.bf16 %v2165, %v2165
      %v2174 = vpack.c.bf16 %v2166, %v2166
      %2175 = vst [vmem:[%s305] sm:$0xf] %v2167
      %2176 = vst [vmem:[%s305 + $0x4] sm:$0xf] %v2168
      %2177 = vst [vmem:[%s305 + $0x8] sm:$0xf] %v2169
      %2178 = vst [vmem:[%s305 + $0xc] sm:$0xf] %v2170
      %2179 = vst [vmem:[%s305 + $0x10] sm:$0xf] %v2171
      %2180 = vst [vmem:[%s305 + $0x14] sm:$0xf] %v2172
      %2181 = vst [vmem:[%s305 + $0x18] sm:$0xf] %v2173
      %2182 = vst [vmem:[%s305 + $0x1c] sm:$0xf] %v2174
      %p2183 = scmp.lt.s32.totalorder %s19, 1
      %s2184 = scalar_select %p2183, %s19, 1
      %s2185 = smul.addr %s2184, 8
      %s2186 = smul.addr %s2185, 4
      %s2187 = scalar_lea.vmem %s8, %s2186
      // Predicated region
      $region53: #{res_block_forward.1} parent=51 // pred_check
        %p2188 = pneg %p210
      $region54: #{res_block_forward.1} parent=51 // pred_check_branch
        %2190 = sbr.rel (%p2188) target = $region56
      $region55: #{res_block_forward.1} parent=51 // pred_region
        _
      $region56: #{res_block_forward.1} parent=51 // pred_fallthru
        _
    $region52: #{res_block_forward.1} parent=5 // pred_fallthru
      _
    %p2191 = scmp.le.s32.totalorder 2, %s14
    // Predicated region
    $region57: #{res_block_forward.1} parent=5 // pred_check
      %p2192 = pneg %p2191
    $region58: #{res_block_forward.1} parent=5 // pred_check_branch
      %2194 = sbr.rel (%p2192) target = $region60
    $region59: #{res_block_forward.1} parent=5 // pred_region
      %s2195 = ssub.s32 %s14, 2
      // Predicated region
      $region61: #{res_block_forward.1} parent=59 // pred_check
        %p2196 = pneg %p216
      $region62: #{res_block_forward.1} parent=59 // pred_check_branch
        %2198 = sbr.rel (%p2196) target = $region64
      $region63: #{res_block_forward.1} parent=59 // pred_region
        %p2199 = scmp.lt.s32.totalorder %s20, 1
        %s2200 = scalar_select %p2199, %s20, 1
        %s2201 = smul.addr %s2200, 8
        %s2202 = smul.addr %s2201, 4
        %s2203 = scalar_lea.vmem %s8, %s2202
      $region64: #{res_block_forward.1} parent=59 // pred_fallthru
        _
    $region60: #{res_block_forward.1} parent=5 // pred_fallthru
      _
  $region6: #{res_block_forward.1} parent=0 // loop_footer
    %s18 = sadd.s32 1, %s14
  $region7: #{res_block_forward.1} parent=0 // loop_footer_branch
    %13 = sbr.rel target = $region3
  $region8: #{res_block_forward.1} parent=0 // loop_exit
    _

</llo_original>
